<compile_context>
chip_gen: v5e
topology: v5e:2x2
jax: 0.10.0
libtpu: 0.0.40
codegen_flags: <defaults>
</compile_context>

<pallas_src>
import functools

import jax
import jax.numpy as jnp
from jax import lax
from jax.experimental import pallas as pl
from jax.experimental.pallas import tpu as pltpu


_HALO = 8  # sublane-aligned halo rows carried on each side of a row tile


def temporal_block_kernel(x_ref, xl_ref, xr_ref, res_ref, w_ref, shift_ref,
                          o_ref, xbuf, *, K, pad, tiles_per_batch):
    """One (TT, VC) row tile of the flattened (N*T, V*C) activation per step.

    x_ref     : (TT, VC)    bf16 input rows (also the identity residual)
    xl_ref    : (HALO, VC)  bf16 rows just above the tile
    xr_ref    : (HALO, VC)  bf16 rows just below the tile
    res_ref   : (TT, VC)    bf16 external residual-module output
    w_ref     : (K, VC, VC) bf16 block-diagonal, BN-scale-folded temporal taps
    shift_ref : (1, VC)     f32 folded conv-bias + BN shift (tiled over V)
    o_ref     : (TT, VC)    bf16 output
    xbuf      : (HALO + TT + HALO, VC) f32 scratch: halo-padded row tile
    """
    TT, VC = x_ref.shape
    i = pl.program_id(0)
    t_in_batch = i % tiles_per_batch
    is_batch_start = t_in_batch == 0
    is_batch_end = t_in_batch == (tiles_per_batch - 1)

    main = x_ref[...].astype(jnp.float32)
    left = xl_ref[...].astype(jnp.float32)
    right = xr_ref[...].astype(jnp.float32)
    # Temporal zero padding: halos must not leak across batch boundaries.
    left = jnp.where(is_batch_start, jnp.zeros_like(left), left)
    right = jnp.where(is_batch_end, jnp.zeros_like(right), right)

    # Halo-padded tile in VMEM; all three stores are 8-row (sublane) aligned.
    xbuf[:_HALO, :] = left
    xbuf[_HALO:_HALO + TT, :] = main
    xbuf[_HALO + TT:, :] = right

    # K accumulating bf16 MXU dots (no K*VC-wide im2col intermediate).  The
    # +/-pad sublane-shifted slices lower to XLU rotates, off the VALU path.
    acc = None
    for k in range(K):
        off = _HALO - pad + k                               # static offset
        lhs = xbuf[off:off + TT, :].astype(jnp.bfloat16)
        p = jnp.dot(lhs, w_ref[k], preferred_element_type=jnp.float32)
        acc = p if acc is None else acc + p

    # Folded bias+BN shift, identity residual, external residual, ReLU in f32.
    y = acc + shift_ref[...] + main + res_ref[...].astype(jnp.float32)
    o_ref[...] = jnp.maximum(y, 0.0).astype(o_ref.dtype)


def _choose_row_tile(T):
    """Largest multiple of 8 dividing T, capped so the grid keeps >= 2 steps/batch."""
    cap = min(512, max(8, T // 2))
    best = 8
    for tt in range(8, cap + 1, 8):
        if T % tt == 0:
            best = tt
    return best


def temporal_basic_block(x_ntvc, res_module_ntvc, weight, bias, gamma, beta,
                         run_mean, run_var, *, temporal_window_size,
                         eps=1e-5, row_tile=None):
    """x_ntvc, res_module_ntvc: (N, T, V, C). weight: PyTorch (C_out, C_in, K, 1)."""
    N, T, V, C = x_ntvc.shape
    K = temporal_window_size
    assert K % 2 == 1, "stride=1 with odd temporal window keeps T_out == T"
    pad = (K - 1) // 2
    assert pad <= _HALO, "temporal window too large for the 8-row halo"
    C_out, C_in, Kt, Kv = weight.shape
    assert Kt == K and Kv == 1
    # Identity residual (residual=True, stride=1) requires matching channels.
    assert C_in == C and C_out == C, "identity residual needs C_in == C_out"
    assert T % 8 == 0, "time axis must be a multiple of 8 (sublane tiling)"
    VC = V * C

    TT = row_tile if row_tile is not None else _choose_row_tile(T)
    assert T % TT == 0 and TT % _HALO == 0
    tiles_per_batch = T // TT
    NT = N * T
    n_tiles = NT // TT
    n_chunks = NT // _HALO
    R = TT // _HALO

    # Fold BN (eval) scale into the conv weights; kernel only adds the shift.
    scale = gamma / jnp.sqrt(run_var + eps)
    shift = (bias - run_mean) * scale + beta
    # (K, C_in, C_out) with BN scale folded on the output channel.
    w_fold = jnp.transpose(weight[:, :, :, 0], (2, 1, 0)) * scale[None, None, :]
    # Block-diagonal over V keeps the whole kernel in the lane-dense (rows, V*C)
    # layout (VC = 128 here, so stores are unmasked full-lane vst).
    # TODO(synk): for large V*C (or C >= 128) switch to a (N*T*V, C) row layout
    # with a dense (K*C, C) folded weight instead of the block-diagonal one.
    eye_v = jnp.eye(V, dtype=jnp.float32)
    w_bd = jnp.einsum("vw,kio->kviwo", eye_v, w_fold).reshape(K, VC, VC)
    w_bd = w_bd.astype(jnp.bfloat16)
    shift_vc = jnp.tile(shift, V).reshape(1, VC).astype(jnp.float32)

    # bf16 HBM streams (kernel is memory-bound); math stays f32 in-kernel.
    x_flat = x_ntvc.reshape(NT, VC).astype(jnp.bfloat16)
    r_flat = res_module_ntvc.reshape(NT, VC).astype(jnp.bfloat16)

    kernel = functools.partial(temporal_block_kernel, K=K, pad=pad,
                               tiles_per_batch=tiles_per_batch)

    cost = pl.CostEstimate(
        flops=2 * K * C * C * V * NT,
        transcendentals=0,
        bytes_accessed=3 * NT * VC * 2 + K * VC * VC * 2 + VC * 4)

    out = pl.pallas_call(
        kernel,
        out_shape=jax.ShapeDtypeStruct((NT, VC), jnp.bfloat16),
        grid_spec=pltpu.PrefetchScalarGridSpec(
            num_scalar_prefetch=0,
            grid=(n_tiles,),
            in_specs=[
                pl.BlockSpec((TT, VC), lambda i: (i, 0)),                 # x rows
                pl.BlockSpec((_HALO, VC),
                             lambda i: (jnp.maximum(i * R - 1, 0), 0)),   # left halo
                pl.BlockSpec((_HALO, VC),
                             lambda i: (jnp.minimum((i + 1) * R,
                                                    n_chunks - 1), 0)),   # right halo
                pl.BlockSpec((TT, VC), lambda i: (i, 0)),                 # res_module
                pl.BlockSpec((K, VC, VC), lambda i: (0, 0, 0)),           # weights
                pl.BlockSpec((1, VC), lambda i: (0, 0)),                  # shift
            ],
            out_specs=pl.BlockSpec((TT, VC), lambda i: (i, 0)),
            scratch_shapes=[pltpu.VMEM((TT + 2 * _HALO, VC), jnp.float32)],
        ),
        compiler_params=pltpu.CompilerParams(
            dimension_semantics=("parallel",)),
        cost_estimate=cost,
    )(x_flat, x_flat, x_flat, r_flat, w_bd, shift_vc)
    return out.reshape(N, T, V, C)


def reference_nchw(x_nchw, res_mod_nchw, weight, bias, gamma, beta, mean, var,
                   K, eps=1e-5):
    """Pure-JAX reference in PyTorch NCHW convention."""
    pad = (K - 1) // 2
    y = lax.conv_general_dilated(
        x_nchw, weight, window_strides=(1, 1),
        padding=((pad, pad), (0, 0)),
        dimension_numbers=("NCHW", "OIHW", "NCHW"))
    y = y + bias.reshape(1, -1, 1, 1)
    scale = gamma / jnp.sqrt(var + eps)
    y = (y - mean.reshape(1, -1, 1, 1)) * scale.reshape(1, -1, 1, 1) \
        + beta.reshape(1, -1, 1, 1)
    y = y + x_nchw + res_mod_nchw  # identity residual + res_module
    return jnp.maximum(y, 0.0)


if __name__ == "__main__":
    # N=2 batch, C=8 channels, T=512 frames, V=16 joints (V*C=128), K=3.
    # -> flattened rows N*T = 1024, row tile 256, grid of 4 parallel steps.
    N, C, T, V, K = 2, 8, 512, 16, 3

    key = jax.random.PRNGKey(0)
    ks = jax.random.split(key, 8)
    # Deterministic synthetic parameters (PyTorch shapes).
    weight = 0.1 * jax.random.normal(ks[0], (C, C, K, 1), jnp.float32)    # Conv2d.weight
    bias = 0.05 * jax.random.normal(ks[1], (C,), jnp.float32)             # Conv2d.bias
    gamma = 1.0 + 0.1 * jax.random.normal(ks[2], (C,), jnp.float32)       # BN.weight
    beta = 0.1 * jax.random.normal(ks[3], (C,), jnp.float32)              # BN.bias
    run_mean = 0.1 * jax.random.normal(ks[4], (C,), jnp.float32)          # BN.running_mean
    run_var = jnp.abs(jax.random.normal(ks[5], (C,), jnp.float32)) + 0.5  # BN.running_var

    # Inputs in PyTorch NCHW convention: (N, C, T, V); round to bf16 once so the
    # kernel (bf16 streams) and the f32 reference see identical activations.
    x_nchw = jax.random.normal(ks[6], (N, C, T, V), jnp.float32)
    res_mod_nchw = jax.random.normal(ks[7], (N, C, T, V), jnp.float32)
    x_nchw = x_nchw.astype(jnp.bfloat16).astype(jnp.float32)
    res_mod_nchw = res_mod_nchw.astype(jnp.bfloat16).astype(jnp.float32)

    # Glue: NCHW -> NTVC (channels on lanes, flattened with V inside the wrapper).
    x_ntvc = jnp.transpose(x_nchw, (0, 2, 3, 1))
    res_mod_ntvc = jnp.transpose(res_mod_nchw, (0, 2, 3, 1))

    out_ntvc = temporal_basic_block(
        x_ntvc, res_mod_ntvc, weight, bias, gamma, beta, run_mean, run_var,
        temporal_window_size=K)
    out_ntvc = jax.block_until_ready(out_ntvc)

    # Verify against plain-JAX reference in NCHW (bf16 I/O -> looser tolerance).
    ref = reference_nchw(x_nchw, res_mod_nchw, weight, bias, gamma, beta,
                         run_mean, run_var, K)
    out_nchw = jnp.transpose(out_ntvc.astype(jnp.float32), (0, 3, 1, 2))
    max_err = jnp.max(jnp.abs(out_nchw - ref))
    assert jnp.allclose(out_nchw, ref, atol=6e-2, rtol=6e-2), \
        f"max abs err {max_err}"

    print("KERNEL_OK")
</pallas_src>

<mosaic_0001>
module attributes {stable_mosaic.version = 11 : i64} {
  func.func @temporal_block_kernel(%arg0: i32, %arg1: memref<256x128xbf16, #tpu.memory_space<vmem>>, %arg2: memref<8x128xbf16, #tpu.memory_space<vmem>>, %arg3: memref<8x128xbf16, #tpu.memory_space<vmem>>, %arg4: memref<256x128xbf16, #tpu.memory_space<vmem>>, %arg5: memref<3x128x128xbf16, #tpu.memory_space<vmem>>, %arg6: memref<1x128xf32, #tpu.memory_space<vmem>>, %arg7: memref<256x128xbf16, #tpu.memory_space<vmem>>, %arg8: memref<272x128xf32, #tpu.memory_space<vmem>>) attributes {dimension_semantics = [#tpu.dimension_semantics<parallel>], iteration_bounds = array<i64: 4>, scalar_prefetch = 0 : i64, scratch_operands = 1 : i64, tpu.core_type = #tpu.core_type<tc>, window_params = [{transform_indices = @transform_0, window_bounds = array<i64: 256, 128>}, {transform_indices = @transform_1, window_bounds = array<i64: 8, 128>}, {transform_indices = @transform_2, window_bounds = array<i64: 8, 128>}, {transform_indices = @transform_3, window_bounds = array<i64: 256, 128>}, {pipeline_mode = #tpu.pipeline_mode<synchronous>, transform_indices = @transform_4, window_bounds = array<i64: 3, 128, 128>}, {pipeline_mode = #tpu.pipeline_mode<synchronous>, transform_indices = @transform_5, window_bounds = array<i64: 1, 128>}, {transform_indices = @transform_6, window_bounds = array<i64: 256, 128>}]} {
    %c2_i32 = arith.constant 2 : i32
    %c0_i32 = arith.constant 0 : i32
    %0 = arith.cmpi eq, %c2_i32, %c0_i32 : i32
    %c1_i32 = arith.constant 1 : i32
    %1 = arith.select %0, %c1_i32, %c2_i32 : i32
    %2 = arith.remsi %arg0, %1 : i32
    %c0_i32_0 = arith.constant 0 : i32
    %3 = arith.cmpi ne, %2, %c0_i32_0 : i32
    %c0_i32_1 = arith.constant 0 : i32
    %4 = arith.cmpi slt, %2, %c0_i32_1 : i32
    %c0_i32_2 = arith.constant 0 : i32
    %5 = arith.cmpi slt, %1, %c0_i32_2 : i32
    %6 = arith.xori %4, %5 : i1
    %7 = arith.andi %6, %3 : i1
    %8 = arith.addi %2, %1 : i32
    %9 = arith.select %7, %8, %2 : i32
    %c0_i32_3 = arith.constant 0 : i32
    %10 = arith.cmpi eq, %9, %c0_i32_3 : i32
    %c1_i32_4 = arith.constant 1 : i32
    %11 = arith.cmpi eq, %9, %c1_i32_4 : i32
    %c0 = arith.constant 0 : index
    %c0_5 = arith.constant 0 : index
    %12 = vector.load %arg1[%c0, %c0_5] : memref<256x128xbf16, #tpu.memory_space<vmem>>, vector<256x128xbf16>
    %13 = arith.extf %12 : vector<256x128xbf16> to vector<256x128xf32>
    %c0_6 = arith.constant 0 : index
    %c0_7 = arith.constant 0 : index
    %14 = vector.load %arg2[%c0_6, %c0_7] : memref<8x128xbf16, #tpu.memory_space<vmem>>, vector<8x128xbf16>
    %15 = arith.extf %14 : vector<8x128xbf16> to vector<8x128xf32>
    %c0_8 = arith.constant 0 : index
    %c0_9 = arith.constant 0 : index
    %16 = vector.load %arg3[%c0_8, %c0_9] : memref<8x128xbf16, #tpu.memory_space<vmem>>, vector<8x128xbf16>
    %17 = arith.extf %16 : vector<8x128xbf16> to vector<8x128xf32>
    %cst = arith.constant 0.000000e+00 : f32
    %18 = vector.broadcast %cst : f32 to vector<8x128xf32>
    %19 = arith.select %10, %18, %15 : vector<8x128xf32>
    %cst_10 = arith.constant 0.000000e+00 : f32
    %20 = vector.broadcast %cst_10 : f32 to vector<8x128xf32>
    %21 = arith.select %11, %20, %17 : vector<8x128xf32>
    %c0_11 = arith.constant 0 : index
    %c0_12 = arith.constant 0 : index
    %22 = vector.load %arg8[%c0_11, %c0_12] : memref<272x128xf32, #tpu.memory_space<vmem>>, vector<8x128xf32>
    tpu.vector_store %arg8[%c0_11, %c0_12], %19 {strides = array<i32>} : memref<272x128xf32, #tpu.memory_space<vmem>>, vector<8x128xf32>,
    %c8 = arith.constant 8 : index
    %c0_13 = arith.constant 0 : index
    %23 = vector.load %arg8[%c8, %c0_13] : memref<272x128xf32, #tpu.memory_space<vmem>>, vector<256x128xf32>
    tpu.vector_store %arg8[%c8, %c0_13], %13 {strides = array<i32>} : memref<272x128xf32, #tpu.memory_space<vmem>>, vector<256x128xf32>,
    %c264 = arith.constant 264 : index
    %c0_14 = arith.constant 0 : index
    %24 = vector.load %arg8[%c264, %c0_14] : memref<272x128xf32, #tpu.memory_space<vmem>>, vector<8x128xf32>
    tpu.vector_store %arg8[%c264, %c0_14], %21 {strides = array<i32>} : memref<272x128xf32, #tpu.memory_space<vmem>>, vector<8x128xf32>,
    %c7 = arith.constant 7 : index
    %c0_15 = arith.constant 0 : index
    %25 = vector.load %arg8[%c7, %c0_15] : memref<272x128xf32, #tpu.memory_space<vmem>>, vector<256x128xf32>
    %26 = arith.truncf %25 : vector<256x128xf32> to vector<256x128xbf16>
    %c0_16 = arith.constant 0 : index
    %c0_17 = arith.constant 0 : index
    %c0_18 = arith.constant 0 : index
    %27 = vector.load %arg5[%c0_16, %c0_17, %c0_18] : memref<3x128x128xbf16, #tpu.memory_space<vmem>>, vector<1x128x128xbf16>
    %28 = vector.shape_cast %27 : vector<1x128x128xbf16> to vector<128x128xbf16>
    %cst_19 = arith.constant dense<0.000000e+00> : vector<256x128xf32>
    %29 = tpu.matmul %26, %28, %cst_19 {dimension_numbers = #tpu.dot_dimension_numbers<[1], [0], [0], [1], [0, 0, 1, 1], [], []>} : vector<256x128xbf16>, vector<128x128xbf16>, vector<256x128xf32> -> vector<256x128xf32>
    %c8_20 = arith.constant 8 : index
    %c0_21 = arith.constant 0 : index
    %30 = vector.load %arg8[%c8_20, %c0_21] : memref<272x128xf32, #tpu.memory_space<vmem>>, vector<256x128xf32>
    %31 = arith.truncf %30 : vector<256x128xf32> to vector<256x128xbf16>
    %c1 = arith.constant 1 : index
    %c0_22 = arith.constant 0 : index
    %c0_23 = arith.constant 0 : index
    %32 = vector.load %arg5[%c1, %c0_22, %c0_23] : memref<3x128x128xbf16, #tpu.memory_space<vmem>>, vector<1x128x128xbf16>
    %33 = vector.shape_cast %32 : vector<1x128x128xbf16> to vector<128x128xbf16>
    %cst_24 = arith.constant dense<0.000000e+00> : vector<256x128xf32>
    %34 = tpu.matmul %31, %33, %cst_24 {dimension_numbers = #tpu.dot_dimension_numbers<[1], [0], [0], [1], [0, 0, 1, 1], [], []>} : vector<256x128xbf16>, vector<128x128xbf16>, vector<256x128xf32> -> vector<256x128xf32>
    %35 = arith.addf %29, %34 : vector<256x128xf32>
    %c9 = arith.constant 9 : index
    %c0_25 = arith.constant 0 : index
    %36 = vector.load %arg8[%c9, %c0_25] : memref<272x128xf32, #tpu.memory_space<vmem>>, vector<256x128xf32>
    %37 = arith.truncf %36 : vector<256x128xf32> to vector<256x128xbf16>
    %c2 = arith.constant 2 : index
    %c0_26 = arith.constant 0 : index
    %c0_27 = arith.constant 0 : index
    %38 = vector.load %arg5[%c2, %c0_26, %c0_27] : memref<3x128x128xbf16, #tpu.memory_space<vmem>>, vector<1x128x128xbf16>
    %39 = vector.shape_cast %38 : vector<1x128x128xbf16> to vector<128x128xbf16>
    %cst_28 = arith.constant dense<0.000000e+00> : vector<256x128xf32>
    %40 = tpu.matmul %37, %39, %cst_28 {dimension_numbers = #tpu.dot_dimension_numbers<[1], [0], [0], [1], [0, 0, 1, 1], [], []>} : vector<256x128xbf16>, vector<128x128xbf16>, vector<256x128xf32> -> vector<256x128xf32>
    %41 = arith.addf %35, %40 : vector<256x128xf32>
    %c0_29 = arith.constant 0 : index
    %c0_30 = arith.constant 0 : index
    %42 = vector.load %arg6[%c0_29, %c0_30] : memref<1x128xf32, #tpu.memory_space<vmem>>, vector<1x128xf32>
    %43 = vector.broadcast %42 : vector<1x128xf32> to vector<256x128xf32>
    %44 = arith.addf %41, %43 : vector<256x128xf32>
    %45 = arith.addf %44, %13 : vector<256x128xf32>
    %c0_31 = arith.constant 0 : index
    %c0_32 = arith.constant 0 : index
    %46 = vector.load %arg4[%c0_31, %c0_32] : memref<256x128xbf16, #tpu.memory_space<vmem>>, vector<256x128xbf16>
    %47 = arith.extf %46 : vector<256x128xbf16> to vector<256x128xf32>
    %48 = arith.addf %45, %47 : vector<256x128xf32>
    %cst_33 = arith.constant 0.000000e+00 : f32
    %49 = vector.broadcast %cst_33 : f32 to vector<256x128xf32>
    %50 = arith.maximumf %48, %49 : vector<256x128xf32>
    %51 = arith.truncf %50 : vector<256x128xf32> to vector<256x128xbf16>
    %c0_34 = arith.constant 0 : index
    %c0_35 = arith.constant 0 : index
    %52 = vector.load %arg7[%c0_34, %c0_35] : memref<256x128xbf16, #tpu.memory_space<vmem>>, vector<256x128xbf16>
    tpu.vector_store %arg7[%c0_34, %c0_35], %51 {strides = array<i32>} : memref<256x128xbf16, #tpu.memory_space<vmem>>, vector<256x128xbf16>,
    return
  }
  func.func @transform_0(%arg0: i32) -> (i32, i32) {
    %c0_i32 = arith.constant 0 : i32
    %c0_i32_0 = arith.constant 0 : i32
    return %arg0, %c0_i32 : i32, i32
  }
  func.func @transform_1(%arg0: i32) -> (i32, i32) {
    %c32_i32 = arith.constant 32 : i32
    %0 = arith.muli %arg0, %c32_i32 : i32
    %c1_i32 = arith.constant 1 : i32
    %1 = arith.subi %0, %c1_i32 : i32
    %c0_i32 = arith.constant 0 : i32
    %2 = arith.maxsi %1, %c0_i32 : i32
    %c0_i32_0 = arith.constant 0 : i32
    %c0_i32_1 = arith.constant 0 : i32
    return %2, %c0_i32_0 : i32, i32
  }
  func.func @transform_2(%arg0: i32) -> (i32, i32) {
    %c1_i32 = arith.constant 1 : i32
    %0 = arith.addi %arg0, %c1_i32 : i32
    %c32_i32 = arith.constant 32 : i32
    %1 = arith.muli %0, %c32_i32 : i32
    %c127_i32 = arith.constant 127 : i32
    %2 = arith.minsi %1, %c127_i32 : i32
    %c0_i32 = arith.constant 0 : i32
    %c0_i32_0 = arith.constant 0 : i32
    return %2, %c0_i32 : i32, i32
  }
  func.func @transform_3(%arg0: i32) -> (i32, i32) {
    %c0_i32 = arith.constant 0 : i32
    %c0_i32_0 = arith.constant 0 : i32
    return %arg0, %c0_i32 : i32, i32
  }
  func.func @transform_4(%arg0: i32) -> (i32, i32, i32) {
    %c0_i32 = arith.constant 0 : i32
    %c0_i32_0 = arith.constant 0 : i32
    %c0_i32_1 = arith.constant 0 : i32
    %c0_i32_2 = arith.constant 0 : i32
    return %c0_i32, %c0_i32_0, %c0_i32_1 : i32, i32, i32
  }
  func.func @transform_5(%arg0: i32) -> (i32, i32) {
    %c0_i32 = arith.constant 0 : i32
    %c0_i32_0 = arith.constant 0 : i32
    %c0_i32_1 = arith.constant 0 : i32
    return %c0_i32, %c0_i32_0 : i32, i32
  }
  func.func @transform_6(%arg0: i32) -> (i32, i32) {
    %c0_i32 = arith.constant 0 : i32
    %c0_i32_0 = arith.constant 0 : i32
    return %arg0, %c0_i32 : i32, i32
  }
}

</mosaic_0001>

<llo_original>
// kernel: tpu_custom_call.1
$region0: #{tpu_custom_call.1}
  #allocation0 [shape = 'u32[]', space=smem, size = 0x4, offset = 0x4, fixed_abs, tag = 'smem constant byte address 0x4 - core index']
  #allocation1 [shape = 'u32[72,128]{1,0:T(1,128)}', space=vmem, size = 0x9000, scoped, tag = 'internal scratch']
  #allocation2 [shape = 'f32[272,128]{1,0:T(8,128)}', space=vmem, size = 0x22000, scoped, tag = 'scratch operand']
  %s0 = inlined_call_operand.hbm [shape: bf16[1024,128], index: 0, kind: input, shape index: {}]
  %s1 = inlined_call_operand.hbm [shape: bf16[1024,128], index: 1, kind: input, shape index: {}]
  %s2 = inlined_call_operand.hbm [shape: bf16[1024,128], index: 2, kind: input, shape index: {}]
  %s3 = inlined_call_operand.hbm [shape: bf16[1024,128], index: 3, kind: input, shape index: {}]
  %s4 = inlined_call_operand.hbm [shape: bf16[3,128,128], index: 4, kind: input, shape index: {}]
  %s5 = inlined_call_operand.vmem [shape: f32[1,128], index: 5, kind: input, shape index: {}]
  %s6 = inlined_call_operand.hbm [shape: bf16[1024,128], index: 6, kind: output, shape index: {}]
  %s7 = sld [smem:[#allocation0]]
  $region77: #{tpu_custom_call.1} parent=0
    _
  %s9 = ssub.s32 1, %s7
  %s10 = scalar_select 0, %s9, %s7
  $region1: #{tpu_custom_call.1} parent=0
    #allocation3 [shape = 'u8[131072]{0}', space=vmem, size = 0x20000, scoped, tag = 'input window, operand 0']
    #allocation4 [shape = 's32[2]{0}', space=sflag, size = 0x8, scoped, tag = 'scoped memory for tpu_custom_call.1']
    #allocation5 [shape = 's32[2]{0}', space=sflag, size = 0x8, scoped, tag = 'scoped memory for tpu_custom_call.1']
    #allocation6 [shape = 'u8[4096]{0}', space=vmem, size = 0x1000, scoped, tag = 'input window, operand 1']
    #allocation7 [shape = 's32[2]{0}', space=sflag, size = 0x8, scoped, tag = 'scoped memory for tpu_custom_call.1']
    #allocation8 [shape = 'u8[4096]{0}', space=vmem, size = 0x1000, scoped, tag = 'input window, operand 2']
    #allocation9 [shape = 'u8[131072]{0}', space=vmem, size = 0x20000, scoped, tag = 'input window, operand 3']
    #allocation10 [shape = 's32[2]{0}', space=sflag, size = 0x8, scoped, tag = 'scoped memory for tpu_custom_call.1']
    #allocation11 [shape = 'u8[98304]{0}', space=vmem, size = 0x18000, scoped, tag = 'input window, operand 4, single buffered']
    #allocation12 [shape = 'u8[131072]{0}', space=vmem, size = 0x20000, scoped, tag = 'output window, operand 0']
    %11 = vsyncpa [#allocation4], 0
    %s12 = scalar_lea.sflag [#allocation4], 1
    %13 = vsyncpa %s12, 0
    %14 = vsyncpa [#allocation7], 0
    %s15 = scalar_lea.sflag [#allocation7], 1
    %16 = vsyncpa %s15, 0
    %17 = vsyncpa [#allocation10], 0
    %s18 = scalar_lea.sflag [#allocation10], 1
    %19 = vsyncpa %s18, 0
    %20 = vsyncpa [#allocation5], 0
    %s21 = scalar_lea.sflag [#allocation5], 1
    %22 = vsyncpa %s21, 0
    loop: start=0, step=1, limit=6
    $region2: #{tpu_custom_call.1} parent=1 // loop_pre_header
      _
    $region3: #{tpu_custom_call.1} parent=1 // loop_header
      %s24 = sphi 0, %s28
      %p25 = scmp.ge.s32.totalorder %s24, 6
      %s34 = sphi 0, %s36
      %s37 = sphi 0, %s34
      %s38 = sphi 0, %s37
      %s54 = sphi 0, %s38
      %s68 = sphi 0, %s70
      %s71 = sphi 0, %s68
      %s72 = sphi 0, %s71
      %s88 = sphi 0, %s72
      %s102 = sphi 0, %s104
      %s105 = sphi 0, %s102
      %s106 = sphi 0, %s105
      %s122 = sphi 0, %s106
      %s128 = sphi 0, %s130
      %s131 = sphi 0, %s128
      %s132 = sphi 0, %s131
      %s148 = sphi 0, %s132
      %s152 = sphi 0, %s152
      %s154 = sphi 0, %s152
      %s155 = sphi 0, %s154
      %s169 = sphi 0, %s155
      %s173 = sphi 0, %s173
      %s175 = sphi 0, %s173
      %s176 = sphi 0, %s175
      %s190 = sphi 0, %s176
      %s196 = sphi 0, %s198
      %s199 = sphi 0, %s196
      %s200 = sphi 0, %s199
      %s216 = sphi 0, %s200
    $region4: #{tpu_custom_call.1} parent=1 // loop_header_branch
      %27 = sbr.rel (%p25) target = $region8
    $region5: #{tpu_custom_call.1} parent=1 // loop_body
      %s29 = ssub.s32 %s24, 1
      %s30 = ssub.s32 %s24, 2
      %s31 = sadd.s32 %s24, 1
      %s32 = ssub.s32 %s24, %s31
      %p33 = scmp.eq.s32.totalorder %s32, 0
      %s35 = sadd.s32 %s34, 1
      %s36 = scalar_select %p33, %s34, %s35
      %p39 = pneg %p33
      %p40 = scmp.eq.s32.totalorder %s24, 3
      %p41 = por %p39, %p40
      %p42 = scmp.ne.s32.totalorder %s34, %s37
      %p43 = scmp.eq.s32.totalorder %s24, 0
      %p44 = por %p42, %p43
      %p45 = scmp.ne.s32.totalorder %s34, %s37
      %p46 = scmp.eq.s32.totalorder %s29, 3
      %p47 = por %p45, %p46
      %p48 = scmp.ne.s32.totalorder %s37, %s38
      %p49 = scmp.eq.s32.totalorder %s29, 0
      %p50 = por %p48, %p49
      %p51 = scmp.ne.s32.totalorder %s37, %s38
      %p52 = scmp.eq.s32.totalorder %s30, 3
      %p53 = por %p51, %p52
      %p55 = scmp.ne.s32.totalorder %s38, %s54
      %p56 = scmp.eq.s32.totalorder %s30, 0
      %p57 = por %p55, %p56
      %s58 = smul.u32 %s24, 32
      %s59 = ssub.s32 %s58, 1
      %p60 = scmp.gt.s32.totalorder %s59, 0
      %s61 = scalar_select %p60, %s59, 0
      %s62 = smul.u32 %s31, 32
      %s63 = ssub.s32 %s62, 1
      %p64 = scmp.gt.s32.totalorder %s63, 0
      %s65 = scalar_select %p64, %s63, 0
      %s66 = ssub.s32 %s61, %s65
      %p67 = scmp.eq.s32.totalorder %s66, 0
      %s69 = sadd.s32 %s68, 1
      %s70 = scalar_select %p67, %s68, %s69
      %p73 = pneg %p67
      %p74 = scmp.eq.s32.totalorder %s24, 3
      %p75 = por %p73, %p74
      %p76 = scmp.ne.s32.totalorder %s68, %s71
      %p77 = scmp.eq.s32.totalorder %s24, 0
      %p78 = por %p76, %p77
      %p79 = scmp.ne.s32.totalorder %s68, %s71
      %p80 = scmp.eq.s32.totalorder %s29, 3
      %p81 = por %p79, %p80
      %p82 = scmp.ne.s32.totalorder %s71, %s72
      %p83 = scmp.eq.s32.totalorder %s29, 0
      %p84 = por %p82, %p83
      %p85 = scmp.ne.s32.totalorder %s71, %s72
      %p86 = scmp.eq.s32.totalorder %s30, 3
      %p87 = por %p85, %p86
      %p89 = scmp.ne.s32.totalorder %s72, %s88
      %p90 = scmp.eq.s32.totalorder %s30, 0
      %p91 = por %p89, %p90
      %s92 = sadd.s32 %s24, 1
      %s93 = smul.u32 %s92, 32
      %p94 = scmp.lt.s32.totalorder %s93, 127
      %s95 = scalar_select %p94, %s93, 127
      %s96 = sadd.s32 %s31, 1
      %s97 = smul.u32 %s96, 32
      %p98 = scmp.lt.s32.totalorder %s97, 127
      %s99 = scalar_select %p98, %s97, 127
      %s100 = ssub.s32 %s95, %s99
      %p101 = scmp.eq.s32.totalorder %s100, 0
      %s103 = sadd.s32 %s102, 1
      %s104 = scalar_select %p101, %s102, %s103
      %p107 = pneg %p101
      %p108 = scmp.eq.s32.totalorder %s24, 3
      %p109 = por %p107, %p108
      %p110 = scmp.ne.s32.totalorder %s102, %s105
      %p111 = scmp.eq.s32.totalorder %s24, 0
      %p112 = por %p110, %p111
      %p113 = scmp.ne.s32.totalorder %s102, %s105
      %p114 = scmp.eq.s32.totalorder %s29, 3
      %p115 = por %p113, %p114
      %p116 = scmp.ne.s32.totalorder %s105, %s106
      %p117 = scmp.eq.s32.totalorder %s29, 0
      %p118 = por %p116, %p117
      %p119 = scmp.ne.s32.totalorder %s105, %s106
      %p120 = scmp.eq.s32.totalorder %s30, 3
      %p121 = por %p119, %p120
      %p123 = scmp.ne.s32.totalorder %s106, %s122
      %p124 = scmp.eq.s32.totalorder %s30, 0
      %p125 = por %p123, %p124
      %s126 = ssub.s32 %s24, %s31
      %p127 = scmp.eq.s32.totalorder %s126, 0
      %s129 = sadd.s32 %s128, 1
      %s130 = scalar_select %p127, %s128, %s129
      %p133 = pneg %p127
      %p134 = scmp.eq.s32.totalorder %s24, 3
      %p135 = por %p133, %p134
      %p136 = scmp.ne.s32.totalorder %s128, %s131
      %p137 = scmp.eq.s32.totalorder %s24, 0
      %p138 = por %p136, %p137
      %p139 = scmp.ne.s32.totalorder %s128, %s131
      %p140 = scmp.eq.s32.totalorder %s29, 3
      %p141 = por %p139, %p140
      %p142 = scmp.ne.s32.totalorder %s131, %s132
      %p143 = scmp.eq.s32.totalorder %s29, 0
      %p144 = por %p142, %p143
      %p145 = scmp.ne.s32.totalorder %s131, %s132
      %p146 = scmp.eq.s32.totalorder %s30, 3
      %p147 = por %p145, %p146
      %p149 = scmp.ne.s32.totalorder %s132, %s148
      %p150 = scmp.eq.s32.totalorder %s30, 0
      %p151 = por %p149, %p150
      %s153 = sadd.s32 %s152, 1
      %p156 = scmp.eq.s32.totalorder %s24, 3
      %p157 = scmp.ne.s32.totalorder %s152, %s154
      %p158 = scmp.eq.s32.totalorder %s24, 0
      %p159 = por %p157, %p158
      %p160 = scmp.ne.s32.totalorder %s152, %s154
      %p161 = scmp.eq.s32.totalorder %s29, 3
      %p162 = por %p160, %p161
      %p163 = scmp.ne.s32.totalorder %s154, %s155
      %p164 = scmp.eq.s32.totalorder %s29, 0
      %p165 = por %p163, %p164
      %p166 = scmp.ne.s32.totalorder %s154, %s155
      %p167 = scmp.eq.s32.totalorder %s30, 3
      %p168 = por %p166, %p167
      %p170 = scmp.ne.s32.totalorder %s155, %s169
      %p171 = scmp.eq.s32.totalorder %s30, 0
      %p172 = por %p170, %p171
      %s174 = sadd.s32 %s173, 1
      %p177 = scmp.eq.s32.totalorder %s24, 3
      %p178 = scmp.ne.s32.totalorder %s173, %s175
      %p179 = scmp.eq.s32.totalorder %s24, 0
      %p180 = por %p178, %p179
      %p181 = scmp.ne.s32.totalorder %s173, %s175
      %p182 = scmp.eq.s32.totalorder %s29, 3
      %p183 = por %p181, %p182
      %p184 = scmp.ne.s32.totalorder %s175, %s176
      %p185 = scmp.eq.s32.totalorder %s29, 0
      %p186 = por %p184, %p185
      %p187 = scmp.ne.s32.totalorder %s175, %s176
      %p188 = scmp.eq.s32.totalorder %s30, 3
      %p189 = por %p187, %p188
      %p191 = scmp.ne.s32.totalorder %s176, %s190
      %p192 = scmp.eq.s32.totalorder %s30, 0
      %p193 = por %p191, %p192
      %s194 = ssub.s32 %s24, %s31
      %p195 = scmp.eq.s32.totalorder %s194, 0
      %s197 = sadd.s32 %s196, 1
      %s198 = scalar_select %p195, %s196, %s197
      %p201 = pneg %p195
      %p202 = scmp.eq.s32.totalorder %s24, 3
      %p203 = por %p201, %p202
      %p204 = scmp.ne.s32.totalorder %s196, %s199
      %p205 = scmp.eq.s32.totalorder %s24, 0
      %p206 = por %p204, %p205
      %p207 = scmp.ne.s32.totalorder %s196, %s199
      %p208 = scmp.eq.s32.totalorder %s29, 3
      %p209 = por %p207, %p208
      %p210 = scmp.ne.s32.totalorder %s199, %s200
      %p211 = scmp.eq.s32.totalorder %s29, 0
      %p212 = por %p210, %p211
      %p213 = scmp.ne.s32.totalorder %s199, %s200
      %p214 = scmp.eq.s32.totalorder %s30, 3
      %p215 = por %p213, %p214
      %p217 = scmp.ne.s32.totalorder %s200, %s216
      %p218 = scmp.eq.s32.totalorder %s30, 0
      %p219 = por %p217, %p218
      %p220 = scmp.le.s32.totalorder 1, %s24
      %p221 = scmp.lt.s32.totalorder %s24, 5
      %p222 = pnand %p220, %p221
      %p223 = pneg %p222
      // Predicated region
      $region9: #{tpu_custom_call.1} parent=5 // pred_check
        _
      $region10: #{tpu_custom_call.1} parent=5 // pred_check_branch
        %225 = sbr.rel (%p222) target = $region12
      $region11: #{tpu_custom_call.1} parent=5 // pred_region
        %s226 = ssub.s32 %s24, 1
        // Predicated region
        $region13: #{tpu_custom_call.1} parent=11 // pred_check
          %p227 = pneg %p165
        $region14: #{tpu_custom_call.1} parent=11 // pred_check_branch
          %229 = sbr.rel (%p227) target = $region16
        $region15: #{tpu_custom_call.1} parent=11 // pred_region
          %231 = vsyncadd [#allocation10], 0
          %s232 = sshll.u32 %s4, 4
          %s233 = int_to_ptr.hbm [resolvable:$true] %s232
          %s234 = sshll.u32 [#allocation11], 4
          %s235 = int_to_ptr.vmem [resolvable:$true] %s234
          %240 = dma.hbm_to_vmem [thread:$0]  %s233, 3072, %s235, [#allocation10], 64, 64, 4
        $region16: #{tpu_custom_call.1} parent=11 // pred_fallthru
          _
        // Predicated region
        $region17: #{tpu_custom_call.1} parent=11 // pred_check
          %p241 = pneg %p186
        $region18: #{tpu_custom_call.1} parent=11 // pred_check_branch
          %243 = sbr.rel (%p241) target = $region20
        $region19: #{tpu_custom_call.1} parent=11 // pred_region
          _
        $region20: #{tpu_custom_call.1} parent=11 // pred_fallthru
          _
      $region12: #{tpu_custom_call.1} parent=5 // pred_fallthru
        _
      %p244 = scmp.lt.s32.totalorder %s24, 4
      // Predicated region
      $region21: #{tpu_custom_call.1} parent=5 // pred_check
        %p245 = pneg %p244
      $region22: #{tpu_custom_call.1} parent=5 // pred_check_branch
        %247 = sbr.rel (%p245) target = $region24
      $region23: #{tpu_custom_call.1} parent=5 // pred_region
        // Predicated region
        $region25: #{tpu_custom_call.1} parent=23 // pred_check
          %p248 = pneg %p44
        $region26: #{tpu_custom_call.1} parent=23 // pred_check_branch
          %250 = sbr.rel (%p248) target = $region28
        $region27: #{tpu_custom_call.1} parent=23 // pred_region
          %s251 = sand.u32 %s34, 1
          %s252 = scalar_lea.sflag [#allocation4], %s251
          %s253 = sand.u32 %s34, 1
          %s254 = smul.addr %s253, 128
          %s255 = scalar_lea.vmem [#allocation3], %s254
          %s256 = smul.u32 32, %s24
          %258 = vsyncadd %s252, 0
          %s259 = smul.addr %s256, 4
          %s260 = scalar_lea.hbm %s0, %s259
          %s261 = sshll.u32 %s260, 4
          %s262 = int_to_ptr.hbm [resolvable:$true] %s261
          %s263 = sshll.u32 %s255, 4
          %s264 = int_to_ptr.vmem [resolvable:$true] %s263
          %269 = dma.hbm_to_vmem [thread:$0]  %s262, 2048, %s264, %s252, 64, 64, 4
        $region28: #{tpu_custom_call.1} parent=23 // pred_fallthru
          _
        // Predicated region
        $region29: #{tpu_custom_call.1} parent=23 // pred_check
          %p270 = pneg %p78
        $region30: #{tpu_custom_call.1} parent=23 // pred_check_branch
          %272 = sbr.rel (%p270) target = $region32
        $region31: #{tpu_custom_call.1} parent=23 // pred_region
          %s273 = sand.u32 %s24, 1
          %s274 = scalar_lea.sflag [#allocation7], %s273
          %s275 = sand.u32 %s68, 1
          %s276 = smul.addr %s275, 4
          %s277 = scalar_lea.vmem [#allocation6], %s276
          %s278 = smul.u32 %s24, 32
          %s279 = ssub.s32 %s278, 1
          %p280 = scmp.gt.s32.totalorder %s279, 0
          %s281 = scalar_select %p280, %s279, 0
          %283 = vsyncadd %s274, 0
          %s284 = smul.addr %s281, 4
          %s285 = scalar_lea.hbm %s1, %s284
          %s287 = sshll.u32 %s285, 4
          %s288 = int_to_ptr.hbm [resolvable:$true] %s287
          %s289 = sshll.u32 %s277, 4
          %s290 = int_to_ptr.vmem [resolvable:$true] %s289
          %292 = dma.hbm_to_vmem [thread:$0]  %s288, 64, %s290, %s274
        $region32: #{tpu_custom_call.1} parent=23 // pred_fallthru
          _
        // Predicated region
        $region33: #{tpu_custom_call.1} parent=23 // pred_check
          %p293 = pneg %p112
        $region34: #{tpu_custom_call.1} parent=23 // pred_check_branch
          %295 = sbr.rel (%p293) target = $region36
        $region35: #{tpu_custom_call.1} parent=23 // pred_region
          %s296 = sand.u32 %s24, 1
          %s297 = scalar_lea.sflag [#allocation7], %s296
          %s298 = sand.u32 %s102, 1
          %s299 = smul.addr %s298, 4
          %s300 = scalar_lea.vmem [#allocation8], %s299
          %s301 = sadd.s32 %s24, 1
          %s302 = smul.u32 %s301, 32
          %p303 = scmp.lt.s32.totalorder %s302, 127
          %s304 = scalar_select %p303, %s302, 127
          %306 = vsyncadd %s297, 0
          %s307 = smul.addr %s304, 4
          %s308 = scalar_lea.hbm %s2, %s307
          %s310 = sshll.u32 %s308, 4
          %s311 = int_to_ptr.hbm [resolvable:$true] %s310
          %s312 = sshll.u32 %s300, 4
          %s313 = int_to_ptr.vmem [resolvable:$true] %s312
          %315 = dma.hbm_to_vmem [thread:$0]  %s311, 64, %s313, %s297
        $region36: #{tpu_custom_call.1} parent=23 // pred_fallthru
          _
        // Predicated region
        $region37: #{tpu_custom_call.1} parent=23 // pred_check
          %p316 = pneg %p138
        $region38: #{tpu_custom_call.1} parent=23 // pred_check_branch
          %318 = sbr.rel (%p316) target = $region40
        $region39: #{tpu_custom_call.1} parent=23 // pred_region
          %s319 = sand.u32 %s24, 1
          %s320 = scalar_lea.sflag [#allocation10], %s319
          %s321 = sand.u32 %s128, 1
          %s322 = smul.addr %s321, 128
          %s323 = scalar_lea.vmem [#allocation9], %s322
          %s324 = smul.u32 32, %s24
          %326 = vsyncadd %s320, 0
          %s327 = smul.addr %s324, 4
          %s328 = scalar_lea.hbm %s3, %s327
          %s329 = sshll.u32 %s328, 4
          %s330 = int_to_ptr.hbm [resolvable:$true] %s329
          %s331 = sshll.u32 %s323, 4
          %s332 = int_to_ptr.vmem [resolvable:$true] %s331
          %337 = dma.hbm_to_vmem [thread:$0]  %s330, 2048, %s332, %s320, 64, 64, 4
        $region40: #{tpu_custom_call.1} parent=23 // pred_fallthru
          _
      $region24: #{tpu_custom_call.1} parent=5 // pred_fallthru
        _
      %p338 = scmp.le.s32.totalorder 1, %s24
      %p339 = scmp.lt.s32.totalorder %s24, 5
      %p340 = pnand %p338, %p339
      %p341 = pneg %p340
      // Predicated region
      $region41: #{tpu_custom_call.1} parent=5 // pred_check
        _
      $region42: #{tpu_custom_call.1} parent=5 // pred_check_branch
        %343 = sbr.rel (%p340) target = $region44
      $region43: #{tpu_custom_call.1} parent=5 // pred_region
        %s344 = ssub.s32 %s24, 1
        %s345 = sand.u32 %s37, 1
        %s346 = scalar_lea.sflag [#allocation4], %s345
        %s347 = sand.u32 %s37, 1
        %s348 = smul.addr %s347, 128
        %s349 = scalar_lea.vmem [#allocation3], %s348
        // Predicated region
        $region45: #{tpu_custom_call.1} parent=43 // pred_check
          %p350 = pneg %p50
        $region46: #{tpu_custom_call.1} parent=43 // pred_check_branch
          %352 = sbr.rel (%p350) target = $region48
        $region47: #{tpu_custom_call.1} parent=43 // pred_region
          %354 = dma.done %s346, 2048
        $region48: #{tpu_custom_call.1} parent=43 // pred_fallthru
          _
        %s355 = sand.u32 %s29, 1
        %s356 = scalar_lea.sflag [#allocation7], %s355
        %s357 = sand.u32 %s71, 1
        %s358 = smul.addr %s357, 4
        %s359 = scalar_lea.vmem [#allocation6], %s358
        // Predicated region
        $region49: #{tpu_custom_call.1} parent=43 // pred_check
          %p360 = pneg %p84
        $region50: #{tpu_custom_call.1} parent=43 // pred_check_branch
          %362 = sbr.rel (%p360) target = $region52
        $region51: #{tpu_custom_call.1} parent=43 // pred_region
          %364 = dma.done %s356, 64
        $region52: #{tpu_custom_call.1} parent=43 // pred_fallthru
          _
        %s365 = sand.u32 %s29, 1
        %s366 = scalar_lea.sflag [#allocation7], %s365
        %s367 = sand.u32 %s105, 1
        %s368 = smul.addr %s367, 4
        %s369 = scalar_lea.vmem [#allocation8], %s368
        // Predicated region
        $region53: #{tpu_custom_call.1} parent=43 // pred_check
          %p370 = pneg %p118
        $region54: #{tpu_custom_call.1} parent=43 // pred_check_branch
          %372 = sbr.rel (%p370) target = $region56
        $region55: #{tpu_custom_call.1} parent=43 // pred_region
          %374 = dma.done %s366, 64
        $region56: #{tpu_custom_call.1} parent=43 // pred_fallthru
          _
        %s375 = sand.u32 %s29, 1
        %s376 = scalar_lea.sflag [#allocation10], %s375
        %s377 = sand.u32 %s131, 1
        %s378 = smul.addr %s377, 128
        %s379 = scalar_lea.vmem [#allocation9], %s378
        // Predicated region
        $region57: #{tpu_custom_call.1} parent=43 // pred_check
          %p380 = pneg %p144
        $region58: #{tpu_custom_call.1} parent=43 // pred_check_branch
          %382 = sbr.rel (%p380) target = $region60
        $region59: #{tpu_custom_call.1} parent=43 // pred_region
          %384 = dma.done %s376, 2048
        $region60: #{tpu_custom_call.1} parent=43 // pred_fallthru
          _
        // Predicated region
        $region61: #{tpu_custom_call.1} parent=43 // pred_check
          %p385 = pneg %p165
        $region62: #{tpu_custom_call.1} parent=43 // pred_check_branch
          %387 = sbr.rel (%p385) target = $region64
        $region63: #{tpu_custom_call.1} parent=43 // pred_region
          %389 = dma.done [#allocation10], 3072
        $region64: #{tpu_custom_call.1} parent=43 // pred_fallthru
          _
        %s390 = sand.u32 %s37, 1
        %s391 = scalar_lea.sflag [#allocation4], %s390
        %s392 = sand.u32 %s37, 1
        %s393 = smul.addr %s392, 128
        %s394 = scalar_lea.vmem [#allocation3], %s393
        %p395 = pneg %p50
        %p396 = pneg %p47
        %s397 = sand.u32 %s29, 1
        %s398 = scalar_lea.sflag [#allocation7], %s397
        %s399 = sand.u32 %s71, 1
        %s400 = smul.addr %s399, 4
        %s401 = scalar_lea.vmem [#allocation6], %s400
        %p402 = pneg %p84
        %p403 = pneg %p81
        %s404 = sand.u32 %s29, 1
        %s405 = scalar_lea.sflag [#allocation7], %s404
        %s406 = sand.u32 %s105, 1
        %s407 = smul.addr %s406, 4
        %s408 = scalar_lea.vmem [#allocation8], %s407
        %p409 = pneg %p118
        %p410 = pneg %p115
        %s411 = sand.u32 %s29, 1
        %s412 = scalar_lea.sflag [#allocation10], %s411
        %s413 = sand.u32 %s131, 1
        %s414 = smul.addr %s413, 128
        %s415 = scalar_lea.vmem [#allocation9], %s414
        %p416 = pneg %p144
        %p417 = pneg %p141
        %p418 = pneg %p165
        %p419 = pneg %p162
        %p420 = pneg %p186
        %p421 = pneg %p183
        %p422 = pneg %p212
        %p423 = pneg %p209
        %s424 = sand.u32 %s199, 1
        %s425 = scalar_lea.sflag [#allocation5], %s424
        %s426 = sand.u32 %s199, 1
        %s427 = smul.addr %s426, 128
        %s428 = scalar_lea.vmem [#allocation12], %s427
        %s429 = smul.u32 32, %s29
        %s430 = smul.u32 %s29, 32
        %s431 = ssub.s32 %s430, 1
        %p432 = scmp.gt.s32.totalorder %s431, 0
        %s433 = scalar_select %p432, %s431, 0
        %s434 = sadd.s32 %s29, 1
        %s435 = smul.u32 %s434, 32
        %p436 = scmp.lt.s32.totalorder %s435, 127
        %s437 = scalar_select %p436, %s435, 127
        %s438 = smul.u32 32, %s29
        %s439 = smul.u32 32, %s29
        %p440 = scmp.lt.s32.totalorder %s29, 0
        %s441 = ssub.s32 0, %s29
        %s442 = scalar_select %p440, %s441, %s29
        %s443 = sand.u32 %s442, 1
        %s444 = ssub.s32 0, %s443
        %s445 = scalar_select %p440, %s444, %s443
        %p446 = scmp.ne.s32.totalorder %s445, 0
        %p447 = scmp.lt.s32.totalorder %s445, 0
        %p448 = pnand %p447, %p446
        %p449 = pneg %p448
        %s450 = sadd.s32 %s445, 2
        %s451 = scalar_select %p449, %s450, %s445
        %p452 = scmp.eq.s32.totalorder %s451, 0
        %p453 = scmp.eq.s32.totalorder %s451, 1
        %v454 = vld [vmem:[%s349] sm:$0xf]
        %v455 = vld [vmem:[%s349 + $0x4] sm:$0xf]
        %v456 = vld [vmem:[%s349 + $0x8] sm:$0xf]
        %v457 = vld [vmem:[%s349 + $0xc] sm:$0xf]
        %v458 = vld [vmem:[%s349 + $0x10] sm:$0xf]
        %v459 = vld [vmem:[%s349 + $0x14] sm:$0xf]
        %v460 = vld [vmem:[%s349 + $0x18] sm:$0xf]
        %v461 = vld [vmem:[%s349 + $0x1c] sm:$0xf]
        %v462 = vld [vmem:[%s349 + $0x20] sm:$0xf]
        %v463 = vld [vmem:[%s349 + $0x24] sm:$0xf]
        %v464 = vld [vmem:[%s349 + $0x28] sm:$0xf]
        %v465 = vld [vmem:[%s349 + $0x2c] sm:$0xf]
        %v466 = vld [vmem:[%s349 + $0x30] sm:$0xf]
        %v467 = vld [vmem:[%s349 + $0x34] sm:$0xf]
        %v468 = vld [vmem:[%s349 + $0x38] sm:$0xf]
        %v469 = vld [vmem:[%s349 + $0x3c] sm:$0xf]
        %v470 = vld [vmem:[%s349 + $0x40] sm:$0xf]
        %v471 = vld [vmem:[%s349 + $0x44] sm:$0xf]
        %v472 = vld [vmem:[%s349 + $0x48] sm:$0xf]
        %v473 = vld [vmem:[%s349 + $0x4c] sm:$0xf]
        %v474 = vld [vmem:[%s349 + $0x50] sm:$0xf]
        %v475 = vld [vmem:[%s349 + $0x54] sm:$0xf]
        %v476 = vld [vmem:[%s349 + $0x58] sm:$0xf]
        %v477 = vld [vmem:[%s349 + $0x5c] sm:$0xf]
        %v478 = vld [vmem:[%s349 + $0x60] sm:$0xf]
        %v479 = vld [vmem:[%s349 + $0x64] sm:$0xf]
        %v480 = vld [vmem:[%s349 + $0x68] sm:$0xf]
        %v481 = vld [vmem:[%s349 + $0x6c] sm:$0xf]
        %v482 = vld [vmem:[%s349 + $0x70] sm:$0xf]
        %v483 = vld [vmem:[%s349 + $0x74] sm:$0xf]
        %v484 = vld [vmem:[%s349 + $0x78] sm:$0xf]
        %v485 = vld [vmem:[%s349 + $0x7c] sm:$0xf]
        %v486 = vunpack.c.l.bf16 %v454
        %v487 = vunpack.c.l.bf16 %v455
        %v488 = vunpack.c.l.bf16 %v456
        %v489 = vunpack.c.l.bf16 %v457
        %v490 = vunpack.c.l.bf16 %v458
        %v491 = vunpack.c.l.bf16 %v459
        %v492 = vunpack.c.l.bf16 %v460
        %v493 = vunpack.c.l.bf16 %v461
        %v494 = vunpack.c.l.bf16 %v462
        %v495 = vunpack.c.l.bf16 %v463
        %v496 = vunpack.c.l.bf16 %v464
        %v497 = vunpack.c.l.bf16 %v465
        %v498 = vunpack.c.l.bf16 %v466
        %v499 = vunpack.c.l.bf16 %v467
        %v500 = vunpack.c.l.bf16 %v468
        %v501 = vunpack.c.l.bf16 %v469
        %v502 = vunpack.c.l.bf16 %v470
        %v503 = vunpack.c.l.bf16 %v471
        %v504 = vunpack.c.l.bf16 %v472
        %v505 = vunpack.c.l.bf16 %v473
        %v506 = vunpack.c.l.bf16 %v474
        %v507 = vunpack.c.l.bf16 %v475
        %v508 = vunpack.c.l.bf16 %v476
        %v509 = vunpack.c.l.bf16 %v477
        %v510 = vunpack.c.l.bf16 %v478
        %v511 = vunpack.c.l.bf16 %v479
        %v512 = vunpack.c.l.bf16 %v480
        %v513 = vunpack.c.l.bf16 %v481
        %v514 = vunpack.c.l.bf16 %v482
        %v515 = vunpack.c.l.bf16 %v483
        %v516 = vunpack.c.l.bf16 %v484
        %v517 = vunpack.c.l.bf16 %v485
        %v518 = vld [vmem:[%s359] sm:$0xf]
        %v519 = vunpack.c.l.bf16 %v518
        %v520 = vld [vmem:[%s369] sm:$0xf]
        %v521 = vunpack.c.l.bf16 %v520
        %s522 = scalar_select %p452, 1, 0
        %v523 = vstv %s522
        %vm524 = vcmp.eq.s32.totalorder %v523, 1
        %v525 = vsel %vm524, 0.0, %v519
        %s526 = scalar_select %p453, 1, 0
        %v527 = vstv %s526
        %vm528 = vcmp.eq.s32.totalorder %v527, 1
        %v529 = vsel %vm528, 0.0, %v521
        %530 = vst [vmem:[#allocation2] sm:$0xff] %v525
        %531 = vst [vmem:[#allocation2 + $0x8] sm:$0xff] %v486
        %532 = vst [vmem:[#allocation2 + $0x10] sm:$0xff] %v487
        %533 = vst [vmem:[#allocation2 + $0x18] sm:$0xff] %v488
        %534 = vst [vmem:[#allocation2 + $0x20] sm:$0xff] %v489
        %535 = vst [vmem:[#allocation2 + $0x28] sm:$0xff] %v490
        %536 = vst [vmem:[#allocation2 + $0x30] sm:$0xff] %v491
        %537 = vst [vmem:[#allocation2 + $0x38] sm:$0xff] %v492
        %538 = vst [vmem:[#allocation2 + $0x40] sm:$0xff] %v493
        %539 = vst [vmem:[#allocation2 + $0x48] sm:$0xff] %v494
        %540 = vst [vmem:[#allocation2 + $0x50] sm:$0xff] %v495
        %541 = vst [vmem:[#allocation2 + $0x58] sm:$0xff] %v496
        %542 = vst [vmem:[#allocation2 + $0x60] sm:$0xff] %v497
        %543 = vst [vmem:[#allocation2 + $0x68] sm:$0xff] %v498
        %544 = vst [vmem:[#allocation2 + $0x70] sm:$0xff] %v499
        %545 = vst [vmem:[#allocation2 + $0x78] sm:$0xff] %v500
        %546 = vst [vmem:[#allocation2 + $0x80] sm:$0xff] %v501
        %547 = vst [vmem:[#allocation2 + $0x88] sm:$0xff] %v502
        %548 = vst [vmem:[#allocation2 + $0x90] sm:$0xff] %v503
        %549 = vst [vmem:[#allocation2 + $0x98] sm:$0xff] %v504
        %550 = vst [vmem:[#allocation2 + $0xa0] sm:$0xff] %v505
        %551 = vst [vmem:[#allocation2 + $0xa8] sm:$0xff] %v506
        %552 = vst [vmem:[#allocation2 + $0xb0] sm:$0xff] %v507
        %553 = vst [vmem:[#allocation2 + $0xb8] sm:$0xff] %v508
        %554 = vst [vmem:[#allocation2 + $0xc0] sm:$0xff] %v509
        %555 = vst [vmem:[#allocation2 + $0xc8] sm:$0xff] %v510
        %556 = vst [vmem:[#allocation2 + $0xd0] sm:$0xff] %v511
        %557 = vst [vmem:[#allocation2 + $0xd8] sm:$0xff] %v512
        %558 = vst [vmem:[#allocation2 + $0xe0] sm:$0xff] %v513
        %559 = vst [vmem:[#allocation2 + $0xe8] sm:$0xff] %v514
        %560 = vst [vmem:[#allocation2 + $0xf0] sm:$0xff] %v515
        %561 = vst [vmem:[#allocation2 + $0xf8] sm:$0xff] %v516
        %562 = vst [vmem:[#allocation2 + $0x100] sm:$0xff] %v517
        %563 = vst [vmem:[#allocation2 + $0x108] sm:$0xff] %v529
        %v564 = vld [vmem:[#allocation2 + $0x7] sm:$0xff]
        %v565 = vld [vmem:[#allocation2 + $0xf] sm:$0xff]
        %v566 = vld [vmem:[#allocation2 + $0x17] sm:$0xff]
        %v567 = vld [vmem:[#allocation2 + $0x1f] sm:$0xff]
        %v568 = vld [vmem:[#allocation2 + $0x27] sm:$0xff]
        %v569 = vld [vmem:[#allocation2 + $0x2f] sm:$0xff]
        %v570 = vld [vmem:[#allocation2 + $0x37] sm:$0xff]
        %v571 = vld [vmem:[#allocation2 + $0x3f] sm:$0xff]
        %v572 = vld [vmem:[#allocation2 + $0x47] sm:$0xff]
        %v573 = vld [vmem:[#allocation2 + $0x4f] sm:$0xff]
        %v574 = vld [vmem:[#allocation2 + $0x57] sm:$0xff]
        %v575 = vld [vmem:[#allocation2 + $0x5f] sm:$0xff]
        %v576 = vld [vmem:[#allocation2 + $0x67] sm:$0xff]
        %v577 = vld [vmem:[#allocation2 + $0x6f] sm:$0xff]
        %v578 = vld [vmem:[#allocation2 + $0x77] sm:$0xff]
        %v579 = vld [vmem:[#allocation2 + $0x7f] sm:$0xff]
        %v580 = vld [vmem:[#allocation2 + $0x87] sm:$0xff]
        %v581 = vld [vmem:[#allocation2 + $0x8f] sm:$0xff]
        %v582 = vld [vmem:[#allocation2 + $0x97] sm:$0xff]
        %v583 = vld [vmem:[#allocation2 + $0x9f] sm:$0xff]
        %v584 = vld [vmem:[#allocation2 + $0xa7] sm:$0xff]
        %v585 = vld [vmem:[#allocation2 + $0xaf] sm:$0xff]
        %v586 = vld [vmem:[#allocation2 + $0xb7] sm:$0xff]
        %v587 = vld [vmem:[#allocation2 + $0xbf] sm:$0xff]
        %v588 = vld [vmem:[#allocation2 + $0xc7] sm:$0xff]
        %v589 = vld [vmem:[#allocation2 + $0xcf] sm:$0xff]
        %v590 = vld [vmem:[#allocation2 + $0xd7] sm:$0xff]
        %v591 = vld [vmem:[#allocation2 + $0xdf] sm:$0xff]
        %v592 = vld [vmem:[#allocation2 + $0xe7] sm:$0xff]
        %v593 = vld [vmem:[#allocation2 + $0xef] sm:$0xff]
        %v594 = vld [vmem:[#allocation2 + $0xf7] sm:$0xff]
        %v595 = vld [vmem:[#allocation2 + $0xff] sm:$0xff]
        %v596 = vpack.c.bf16 %v565, %v564
        %v597 = vpack.c.bf16 %v567, %v566
        %v598 = vpack.c.bf16 %v569, %v568
        %v599 = vpack.c.bf16 %v571, %v570
        %v600 = vpack.c.bf16 %v573, %v572
        %v601 = vpack.c.bf16 %v575, %v574
        %v602 = vpack.c.bf16 %v577, %v576
        %v603 = vpack.c.bf16 %v579, %v578
        %v604 = vpack.c.bf16 %v581, %v580
        %v605 = vpack.c.bf16 %v583, %v582
        %v606 = vpack.c.bf16 %v585, %v584
        %v607 = vpack.c.bf16 %v587, %v586
        %v608 = vpack.c.bf16 %v589, %v588
        %v609 = vpack.c.bf16 %v591, %v590
        %v610 = vpack.c.bf16 %v593, %v592
        %v611 = vpack.c.bf16 %v595, %v594
        %v612 = vld [vmem:[#allocation11] sm:$0xf]
        %v613 = vld [vmem:[#allocation11 + $0x4] sm:$0xf]
        %v614 = vld [vmem:[#allocation11 + $0x8] sm:$0xf]
        %v615 = vld [vmem:[#allocation11 + $0xc] sm:$0xf]
        %v616 = vld [vmem:[#allocation11 + $0x10] sm:$0xf]
        %v617 = vld [vmem:[#allocation11 + $0x14] sm:$0xf]
        %v618 = vld [vmem:[#allocation11 + $0x18] sm:$0xf]
        %v619 = vld [vmem:[#allocation11 + $0x1c] sm:$0xf]
        %v620 = vld [vmem:[#allocation11 + $0x20] sm:$0xf]
        %v621 = vld [vmem:[#allocation11 + $0x24] sm:$0xf]
        %v622 = vld [vmem:[#allocation11 + $0x28] sm:$0xf]
        %v623 = vld [vmem:[#allocation11 + $0x2c] sm:$0xf]
        %v624 = vld [vmem:[#allocation11 + $0x30] sm:$0xf]
        %v625 = vld [vmem:[#allocation11 + $0x34] sm:$0xf]
        %v626 = vld [vmem:[#allocation11 + $0x38] sm:$0xf]
        %v627 = vld [vmem:[#allocation11 + $0x3c] sm:$0xf]
        %v628 = vld [vmem:[#allocation2 + $0x8] sm:$0xff]
        %v629 = vld [vmem:[#allocation2 + $0x10] sm:$0xff]
        %v630 = vld [vmem:[#allocation2 + $0x18] sm:$0xff]
        %v631 = vld [vmem:[#allocation2 + $0x20] sm:$0xff]
        %v632 = vld [vmem:[#allocation2 + $0x28] sm:$0xff]
        %v633 = vld [vmem:[#allocation2 + $0x30] sm:$0xff]
        %v634 = vld [vmem:[#allocation2 + $0x38] sm:$0xff]
        %v635 = vld [vmem:[#allocation2 + $0x40] sm:$0xff]
        %v636 = vld [vmem:[#allocation2 + $0x48] sm:$0xff]
        %v637 = vld [vmem:[#allocation2 + $0x50] sm:$0xff]
        %v638 = vld [vmem:[#allocation2 + $0x58] sm:$0xff]
        %v639 = vld [vmem:[#allocation2 + $0x60] sm:$0xff]
        %v640 = vld [vmem:[#allocation2 + $0x68] sm:$0xff]
        %v641 = vld [vmem:[#allocation2 + $0x70] sm:$0xff]
        %v642 = vld [vmem:[#allocation2 + $0x78] sm:$0xff]
        %v643 = vld [vmem:[#allocation2 + $0x80] sm:$0xff]
        %v644 = vld [vmem:[#allocation2 + $0x88] sm:$0xff]
        %v645 = vld [vmem:[#allocation2 + $0x90] sm:$0xff]
        %v646 = vld [vmem:[#allocation2 + $0x98] sm:$0xff]
        %v647 = vld [vmem:[#allocation2 + $0xa0] sm:$0xff]
        %v648 = vld [vmem:[#allocation2 + $0xa8] sm:$0xff]
        %v649 = vld [vmem:[#allocation2 + $0xb0] sm:$0xff]
        %v650 = vld [vmem:[#allocation2 + $0xb8] sm:$0xff]
        %v651 = vld [vmem:[#allocation2 + $0xc0] sm:$0xff]
        %v652 = vld [vmem:[#allocation2 + $0xc8] sm:$0xff]
        %v653 = vld [vmem:[#allocation2 + $0xd0] sm:$0xff]
        %v654 = vld [vmem:[#allocation2 + $0xd8] sm:$0xff]
        %v655 = vld [vmem:[#allocation2 + $0xe0] sm:$0xff]
        %v656 = vld [vmem:[#allocation2 + $0xe8] sm:$0xff]
        %v657 = vld [vmem:[#allocation2 + $0xf0] sm:$0xff]
        %v658 = vld [vmem:[#allocation2 + $0xf8] sm:$0xff]
        %v659 = vld [vmem:[#allocation2 + $0x100] sm:$0xff]
        %v660 = vpack.c.bf16 %v629, %v628
        %v661 = vpack.c.bf16 %v631, %v630
        %v662 = vpack.c.bf16 %v633, %v632
        %v663 = vpack.c.bf16 %v635, %v634
        %v664 = vpack.c.bf16 %v637, %v636
        %v665 = vpack.c.bf16 %v639, %v638
        %v666 = vpack.c.bf16 %v641, %v640
        %v667 = vpack.c.bf16 %v643, %v642
        %v668 = vpack.c.bf16 %v645, %v644
        %v669 = vpack.c.bf16 %v647, %v646
        %v670 = vpack.c.bf16 %v649, %v648
        %v671 = vpack.c.bf16 %v651, %v650
        %v672 = vpack.c.bf16 %v653, %v652
        %v673 = vpack.c.bf16 %v655, %v654
        %v674 = vpack.c.bf16 %v657, %v656
        %v675 = vpack.c.bf16 %v659, %v658
        %s676 = scalar_lea.vmem [#allocation11], 64
        %v677 = vld [vmem:[%s676] sm:$0xf]
        %v678 = vld [vmem:[%s676 + $0x4] sm:$0xf]
        %v679 = vld [vmem:[%s676 + $0x8] sm:$0xf]
        %v680 = vld [vmem:[%s676 + $0xc] sm:$0xf]
        %v681 = vld [vmem:[%s676 + $0x10] sm:$0xf]
        %v682 = vld [vmem:[%s676 + $0x14] sm:$0xf]
        %v683 = vld [vmem:[%s676 + $0x18] sm:$0xf]
        %v684 = vld [vmem:[%s676 + $0x1c] sm:$0xf]
        %v685 = vld [vmem:[%s676 + $0x20] sm:$0xf]
        %v686 = vld [vmem:[%s676 + $0x24] sm:$0xf]
        %v687 = vld [vmem:[%s676 + $0x28] sm:$0xf]
        %v688 = vld [vmem:[%s676 + $0x2c] sm:$0xf]
        %v689 = vld [vmem:[%s676 + $0x30] sm:$0xf]
        %v690 = vld [vmem:[%s676 + $0x34] sm:$0xf]
        %v691 = vld [vmem:[%s676 + $0x38] sm:$0xf]
        %v692 = vld [vmem:[%s676 + $0x3c] sm:$0xf]
        %v709 = vunpack.c.l.b16 %v677
        %v710 = vunpack.c.l.b16 %v678
        %v711 = vunpack.c.l.b16 %v679
        %v712 = vunpack.c.l.b16 %v680
        %v713 = vunpack.c.l.b16 %v681
        %v714 = vunpack.c.l.b16 %v682
        %v715 = vunpack.c.l.b16 %v683
        %v716 = vunpack.c.l.b16 %v684
        %v717 = vunpack.c.l.b16 %v685
        %v718 = vunpack.c.l.b16 %v686
        %v719 = vunpack.c.l.b16 %v687
        %v720 = vunpack.c.l.b16 %v688
        %v721 = vunpack.c.l.b16 %v689
        %v722 = vunpack.c.l.b16 %v690
        %v723 = vunpack.c.l.b16 %v691
        %v724 = vunpack.c.l.b16 %v692
        %v725 = vpack.c.b16 %v710, %v709
        %v726 = vpack.c.b16 %v712, %v711
        %v727 = vpack.c.b16 %v714, %v713
        %v728 = vpack.c.b16 %v716, %v715
        %v729 = vpack.c.b16 %v718, %v717
        %v730 = vpack.c.b16 %v720, %v719
        %v731 = vpack.c.b16 %v722, %v721
        %v732 = vpack.c.b16 %v724, %v723
        %741 = vmatpush.bf16.msra.mxu0 %v732
        %742 = vmatpush.bf16.msra.mxu0 %v731
        %743 = vmatpush.bf16.msra.mxu0 %v730
        %744 = vmatpush.bf16.msra.mxu0 %v729
        %745 = vmatpush.bf16.msra.mxu0 %v728
        %746 = vmatpush.bf16.msra.mxu0 %v727
        %747 = vmatpush.bf16.msra.mxu0 %v726
        %748 = vmatpush.bf16.msra.mxu0 %v725
        %749 = vmatmul.bf16.gmra.mxu0 %v660
        %v750 = vpop.f32.mrf.mxu0
        %v751 = vadd.f32 0.0, %v750
        %v752 = vpop.f32.mrf.mxu0
        %v753 = vadd.f32 0.0, %v752
        %754 = vmatmul.bf16.gmra.mxu0 %v661
        %v755 = vpop.f32.mrf.mxu0
        %v756 = vadd.f32 0.0, %v755
        %v757 = vpop.f32.mrf.mxu0
        %v758 = vadd.f32 0.0, %v757
        %759 = vmatmul.bf16.gmra.mxu0 %v662
        %v760 = vpop.f32.mrf.mxu0
        %v761 = vadd.f32 0.0, %v760
        %v762 = vpop.f32.mrf.mxu0
        %v763 = vadd.f32 0.0, %v762
        %764 = vmatmul.bf16.gmra.mxu0 %v663
        %v765 = vpop.f32.mrf.mxu0
        %v766 = vadd.f32 0.0, %v765
        %v767 = vpop.f32.mrf.mxu0
        %v768 = vadd.f32 0.0, %v767
        %769 = vmatmul.bf16.gmra.mxu0 %v664
        %v770 = vpop.f32.mrf.mxu0
        %v771 = vadd.f32 0.0, %v770
        %v772 = vpop.f32.mrf.mxu0
        %v773 = vadd.f32 0.0, %v772
        %774 = vmatmul.bf16.gmra.mxu0 %v665
        %v775 = vpop.f32.mrf.mxu0
        %v776 = vadd.f32 0.0, %v775
        %v777 = vpop.f32.mrf.mxu0
        %v778 = vadd.f32 0.0, %v777
        %779 = vmatmul.bf16.gmra.mxu0 %v666
        %v780 = vpop.f32.mrf.mxu0
        %v781 = vadd.f32 0.0, %v780
        %v782 = vpop.f32.mrf.mxu0
        %v783 = vadd.f32 0.0, %v782
        %784 = vmatmul.bf16.gmra.mxu0 %v667
        %v785 = vpop.f32.mrf.mxu0
        %v786 = vadd.f32 0.0, %v785
        %v787 = vpop.f32.mrf.mxu0
        %v788 = vadd.f32 0.0, %v787
        %789 = vmatmul.bf16.gmra.mxu0 %v668
        %v790 = vpop.f32.mrf.mxu0
        %v791 = vadd.f32 0.0, %v790
        %v792 = vpop.f32.mrf.mxu0
        %v793 = vadd.f32 0.0, %v792
        %794 = vmatmul.bf16.gmra.mxu0 %v669
        %v795 = vpop.f32.mrf.mxu0
        %v796 = vadd.f32 0.0, %v795
        %v797 = vpop.f32.mrf.mxu0
        %v798 = vadd.f32 0.0, %v797
        %799 = vmatmul.bf16.gmra.mxu0 %v670
        %v800 = vpop.f32.mrf.mxu0
        %v801 = vadd.f32 0.0, %v800
        %v802 = vpop.f32.mrf.mxu0
        %v803 = vadd.f32 0.0, %v802
        %804 = vmatmul.bf16.gmra.mxu0 %v671
        %v805 = vpop.f32.mrf.mxu0
        %v806 = vadd.f32 0.0, %v805
        %v807 = vpop.f32.mrf.mxu0
        %v808 = vadd.f32 0.0, %v807
        %809 = vmatmul.bf16.gmra.mxu0 %v672
        %v810 = vpop.f32.mrf.mxu0
        %v811 = vadd.f32 0.0, %v810
        %v812 = vpop.f32.mrf.mxu0
        %v813 = vadd.f32 0.0, %v812
        %814 = vmatmul.bf16.gmra.mxu0 %v673
        %v815 = vpop.f32.mrf.mxu0
        %v816 = vadd.f32 0.0, %v815
        %v817 = vpop.f32.mrf.mxu0
        %v818 = vadd.f32 0.0, %v817
        %819 = vmatmul.bf16.gmra.mxu0 %v674
        %v820 = vpop.f32.mrf.mxu0
        %v821 = vadd.f32 0.0, %v820
        %v822 = vpop.f32.mrf.mxu0
        %v823 = vadd.f32 0.0, %v822
        %824 = vmatmul.bf16.gmra.mxu0 %v675
        %v825 = vpop.f32.mrf.mxu0
        %v826 = vadd.f32 0.0, %v825
        %v827 = vpop.f32.mrf.mxu0
        %v828 = vadd.f32 0.0, %v827
        %829 = vdwg.mxu0
        %v846 = vunpack.c.l.b16 %v612
        %v847 = vunpack.c.l.b16 %v613
        %v848 = vunpack.c.l.b16 %v614
        %v849 = vunpack.c.l.b16 %v615
        %v850 = vunpack.c.l.b16 %v616
        %v851 = vunpack.c.l.b16 %v617
        %v852 = vunpack.c.l.b16 %v618
        %v853 = vunpack.c.l.b16 %v619
        %v854 = vunpack.c.l.b16 %v620
        %v855 = vunpack.c.l.b16 %v621
        %v856 = vunpack.c.l.b16 %v622
        %v857 = vunpack.c.l.b16 %v623
        %v858 = vunpack.c.l.b16 %v624
        %v859 = vunpack.c.l.b16 %v625
        %v860 = vunpack.c.l.b16 %v626
        %v861 = vunpack.c.l.b16 %v627
        %v862 = vpack.c.b16 %v847, %v846
        %v863 = vpack.c.b16 %v849, %v848
        %v864 = vpack.c.b16 %v851, %v850
        %v865 = vpack.c.b16 %v853, %v852
        %v866 = vpack.c.b16 %v855, %v854
        %v867 = vpack.c.b16 %v857, %v856
        %v868 = vpack.c.b16 %v859, %v858
        %v869 = vpack.c.b16 %v861, %v860
        %878 = vmatpush.bf16.msra.mxu0 %v869
        %879 = vmatpush.bf16.msra.mxu0 %v868
        %880 = vmatpush.bf16.msra.mxu0 %v867
        %881 = vmatpush.bf16.msra.mxu0 %v866
        %882 = vmatpush.bf16.msra.mxu0 %v865
        %883 = vmatpush.bf16.msra.mxu0 %v864
        %884 = vmatpush.bf16.msra.mxu0 %v863
        %885 = vmatpush.bf16.msra.mxu0 %v862
        %886 = vmatmul.bf16.gmra.mxu0 %v596
        %v887 = vpop.f32.mrf.mxu0
        %v888 = vadd.f32 %v751, %v887
        %v889 = vpop.f32.mrf.mxu0
        %v890 = vadd.f32 %v753, %v889
        %891 = vmatmul.bf16.gmra.mxu0 %v597
        %v892 = vpop.f32.mrf.mxu0
        %v893 = vadd.f32 %v756, %v892
        %v894 = vpop.f32.mrf.mxu0
        %v895 = vadd.f32 %v758, %v894
        %896 = vmatmul.bf16.gmra.mxu0 %v598
        %v897 = vpop.f32.mrf.mxu0
        %v898 = vadd.f32 %v761, %v897
        %v899 = vpop.f32.mrf.mxu0
        %v900 = vadd.f32 %v763, %v899
        %901 = vmatmul.bf16.gmra.mxu0 %v599
        %v902 = vpop.f32.mrf.mxu0
        %v903 = vadd.f32 %v766, %v902
        %v904 = vpop.f32.mrf.mxu0
        %v905 = vadd.f32 %v768, %v904
        %906 = vmatmul.bf16.gmra.mxu0 %v600
        %v907 = vpop.f32.mrf.mxu0
        %v908 = vadd.f32 %v771, %v907
        %v909 = vpop.f32.mrf.mxu0
        %v910 = vadd.f32 %v773, %v909
        %911 = vmatmul.bf16.gmra.mxu0 %v601
        %v912 = vpop.f32.mrf.mxu0
        %v913 = vadd.f32 %v776, %v912
        %v914 = vpop.f32.mrf.mxu0
        %v915 = vadd.f32 %v778, %v914
        %916 = vmatmul.bf16.gmra.mxu0 %v602
        %v917 = vpop.f32.mrf.mxu0
        %v918 = vadd.f32 %v781, %v917
        %v919 = vpop.f32.mrf.mxu0
        %v920 = vadd.f32 %v783, %v919
        %921 = vmatmul.bf16.gmra.mxu0 %v603
        %v922 = vpop.f32.mrf.mxu0
        %v923 = vadd.f32 %v786, %v922
        %v924 = vpop.f32.mrf.mxu0
        %v925 = vadd.f32 %v788, %v924
        %926 = vmatmul.bf16.gmra.mxu0 %v604
        %v927 = vpop.f32.mrf.mxu0
        %v928 = vadd.f32 %v791, %v927
        %v929 = vpop.f32.mrf.mxu0
        %v930 = vadd.f32 %v793, %v929
        %931 = vmatmul.bf16.gmra.mxu0 %v605
        %v932 = vpop.f32.mrf.mxu0
        %v933 = vadd.f32 %v796, %v932
        %v934 = vpop.f32.mrf.mxu0
        %v935 = vadd.f32 %v798, %v934
        %936 = vmatmul.bf16.gmra.mxu0 %v606
        %v937 = vpop.f32.mrf.mxu0
        %v938 = vadd.f32 %v801, %v937
        %v939 = vpop.f32.mrf.mxu0
        %v940 = vadd.f32 %v803, %v939
        %941 = vmatmul.bf16.gmra.mxu0 %v607
        %v942 = vpop.f32.mrf.mxu0
        %v943 = vadd.f32 %v806, %v942
        %v944 = vpop.f32.mrf.mxu0
        %v945 = vadd.f32 %v808, %v944
        %946 = vmatmul.bf16.gmra.mxu0 %v608
        %v947 = vpop.f32.mrf.mxu0
        %v948 = vadd.f32 %v811, %v947
        %v949 = vpop.f32.mrf.mxu0
        %v950 = vadd.f32 %v813, %v949
        %951 = vmatmul.bf16.gmra.mxu0 %v609
        %v952 = vpop.f32.mrf.mxu0
        %v953 = vadd.f32 %v816, %v952
        %v954 = vpop.f32.mrf.mxu0
        %v955 = vadd.f32 %v818, %v954
        %956 = vmatmul.bf16.gmra.mxu0 %v610
        %v957 = vpop.f32.mrf.mxu0
        %v958 = vadd.f32 %v821, %v957
        %v959 = vpop.f32.mrf.mxu0
        %v960 = vadd.f32 %v823, %v959
        %961 = vmatmul.bf16.gmra.mxu0 %v611
        %v962 = vpop.f32.mrf.mxu0
        %v963 = vadd.f32 %v826, %v962
        %v964 = vpop.f32.mrf.mxu0
        %v965 = vadd.f32 %v828, %v964
        %966 = vdwg.mxu0
        %v967 = vld [vmem:[#allocation2 + $0x9] sm:$0xff]
        %v968 = vld [vmem:[#allocation2 + $0x11] sm:$0xff]
        %v969 = vld [vmem:[#allocation2 + $0x19] sm:$0xff]
        %v970 = vld [vmem:[#allocation2 + $0x21] sm:$0xff]
        %v971 = vld [vmem:[#allocation2 + $0x29] sm:$0xff]
        %v972 = vld [vmem:[#allocation2 + $0x31] sm:$0xff]
        %v973 = vld [vmem:[#allocation2 + $0x39] sm:$0xff]
        %v974 = vld [vmem:[#allocation2 + $0x41] sm:$0xff]
        %v975 = vld [vmem:[#allocation2 + $0x49] sm:$0xff]
        %v976 = vld [vmem:[#allocation2 + $0x51] sm:$0xff]
        %v977 = vld [vmem:[#allocation2 + $0x59] sm:$0xff]
        %v978 = vld [vmem:[#allocation2 + $0x61] sm:$0xff]
        %v979 = vld [vmem:[#allocation2 + $0x69] sm:$0xff]
        %v980 = vld [vmem:[#allocation2 + $0x71] sm:$0xff]
        %v981 = vld [vmem:[#allocation2 + $0x79] sm:$0xff]
        %v982 = vld [vmem:[#allocation2 + $0x81] sm:$0xff]
        %v983 = vld [vmem:[#allocation2 + $0x89] sm:$0xff]
        %v984 = vld [vmem:[#allocation2 + $0x91] sm:$0xff]
        %v985 = vld [vmem:[#allocation2 + $0x99] sm:$0xff]
        %v986 = vld [vmem:[#allocation2 + $0xa1] sm:$0xff]
        %v987 = vld [vmem:[#allocation2 + $0xa9] sm:$0xff]
        %v988 = vld [vmem:[#allocation2 + $0xb1] sm:$0xff]
        %v989 = vld [vmem:[#allocation2 + $0xb9] sm:$0xff]
        %v990 = vld [vmem:[#allocation2 + $0xc1] sm:$0xff]
        %v991 = vld [vmem:[#allocation2 + $0xc9] sm:$0xff]
        %v992 = vld [vmem:[#allocation2 + $0xd1] sm:$0xff]
        %v993 = vld [vmem:[#allocation2 + $0xd9] sm:$0xff]
        %v994 = vld [vmem:[#allocation2 + $0xe1] sm:$0xff]
        %v995 = vld [vmem:[#allocation2 + $0xe9] sm:$0xff]
        %v996 = vld [vmem:[#allocation2 + $0xf1] sm:$0xff]
        %v997 = vld [vmem:[#allocation2 + $0xf9] sm:$0xff]
        %v998 = vld [vmem:[#allocation2 + $0x101] sm:$0xff]
        %v999 = vpack.c.bf16 %v968, %v967
        %v1000 = vpack.c.bf16 %v970, %v969
        %v1001 = vpack.c.bf16 %v972, %v971
        %v1002 = vpack.c.bf16 %v974, %v973
        %v1003 = vpack.c.bf16 %v976, %v975
        %v1004 = vpack.c.bf16 %v978, %v977
        %v1005 = vpack.c.bf16 %v980, %v979
        %v1006 = vpack.c.bf16 %v982, %v981
        %v1007 = vpack.c.bf16 %v984, %v983
        %v1008 = vpack.c.bf16 %v986, %v985
        %v1009 = vpack.c.bf16 %v988, %v987
        %v1010 = vpack.c.bf16 %v990, %v989
        %v1011 = vpack.c.bf16 %v992, %v991
        %v1012 = vpack.c.bf16 %v994, %v993
        %v1013 = vpack.c.bf16 %v996, %v995
        %v1014 = vpack.c.bf16 %v998, %v997
        %s1015 = scalar_lea.vmem [#allocation11], 128
        %v1016 = vld [vmem:[%s1015] sm:$0xf]
        %v1017 = vld [vmem:[%s1015 + $0x4] sm:$0xf]
        %v1018 = vld [vmem:[%s1015 + $0x8] sm:$0xf]
        %v1019 = vld [vmem:[%s1015 + $0xc] sm:$0xf]
        %v1020 = vld [vmem:[%s1015 + $0x10] sm:$0xf]
        %v1021 = vld [vmem:[%s1015 + $0x14] sm:$0xf]
        %v1022 = vld [vmem:[%s1015 + $0x18] sm:$0xf]
        %v1023 = vld [vmem:[%s1015 + $0x1c] sm:$0xf]
        %v1024 = vld [vmem:[%s1015 + $0x20] sm:$0xf]
        %v1025 = vld [vmem:[%s1015 + $0x24] sm:$0xf]
        %v1026 = vld [vmem:[%s1015 + $0x28] sm:$0xf]
        %v1027 = vld [vmem:[%s1015 + $0x2c] sm:$0xf]
        %v1028 = vld [vmem:[%s1015 + $0x30] sm:$0xf]
        %v1029 = vld [vmem:[%s1015 + $0x34] sm:$0xf]
        %v1030 = vld [vmem:[%s1015 + $0x38] sm:$0xf]
        %v1031 = vld [vmem:[%s1015 + $0x3c] sm:$0xf]
        %v1048 = vunpack.c.l.b16 %v1016
        %v1049 = vunpack.c.l.b16 %v1017
        %v1050 = vunpack.c.l.b16 %v1018
        %v1051 = vunpack.c.l.b16 %v1019
        %v1052 = vunpack.c.l.b16 %v1020
        %v1053 = vunpack.c.l.b16 %v1021
        %v1054 = vunpack.c.l.b16 %v1022
        %v1055 = vunpack.c.l.b16 %v1023
        %v1056 = vunpack.c.l.b16 %v1024
        %v1057 = vunpack.c.l.b16 %v1025
        %v1058 = vunpack.c.l.b16 %v1026
        %v1059 = vunpack.c.l.b16 %v1027
        %v1060 = vunpack.c.l.b16 %v1028
        %v1061 = vunpack.c.l.b16 %v1029
        %v1062 = vunpack.c.l.b16 %v1030
        %v1063 = vunpack.c.l.b16 %v1031
        %v1064 = vpack.c.b16 %v1049, %v1048
        %v1065 = vpack.c.b16 %v1051, %v1050
        %v1066 = vpack.c.b16 %v1053, %v1052
        %v1067 = vpack.c.b16 %v1055, %v1054
        %v1068 = vpack.c.b16 %v1057, %v1056
        %v1069 = vpack.c.b16 %v1059, %v1058
        %v1070 = vpack.c.b16 %v1061, %v1060
        %v1071 = vpack.c.b16 %v1063, %v1062
        %1080 = vmatpush.bf16.msra.mxu0 %v1071
        %1081 = vmatpush.bf16.msra.mxu0 %v1070
        %1082 = vmatpush.bf16.msra.mxu0 %v1069
        %1083 = vmatpush.bf16.msra.mxu0 %v1068
        %1084 = vmatpush.bf16.msra.mxu0 %v1067
        %1085 = vmatpush.bf16.msra.mxu0 %v1066
        %1086 = vmatpush.bf16.msra.mxu0 %v1065
        %1087 = vmatpush.bf16.msra.mxu0 %v1064
        %1088 = vmatmul.bf16.gmra.mxu0 %v999
        %v1089 = vpop.f32.mrf.mxu0
        %v1090 = vadd.f32 0.0, %v1089
        %v1091 = vpop.f32.mrf.mxu0
        %v1092 = vadd.f32 0.0, %v1091
        %1093 = vmatmul.bf16.gmra.mxu0 %v1000
        %v1094 = vpop.f32.mrf.mxu0
        %v1095 = vadd.f32 0.0, %v1094
        %v1096 = vpop.f32.mrf.mxu0
        %v1097 = vadd.f32 0.0, %v1096
        %1098 = vmatmul.bf16.gmra.mxu0 %v1001
        %v1099 = vpop.f32.mrf.mxu0
        %v1100 = vadd.f32 0.0, %v1099
        %v1101 = vpop.f32.mrf.mxu0
        %v1102 = vadd.f32 0.0, %v1101
        %1103 = vmatmul.bf16.gmra.mxu0 %v1002
        %v1104 = vpop.f32.mrf.mxu0
        %v1105 = vadd.f32 0.0, %v1104
        %v1106 = vpop.f32.mrf.mxu0
        %v1107 = vadd.f32 0.0, %v1106
        %1108 = vmatmul.bf16.gmra.mxu0 %v1003
        %v1109 = vpop.f32.mrf.mxu0
        %v1110 = vadd.f32 0.0, %v1109
        %v1111 = vpop.f32.mrf.mxu0
        %v1112 = vadd.f32 0.0, %v1111
        %1113 = vmatmul.bf16.gmra.mxu0 %v1004
        %v1114 = vpop.f32.mrf.mxu0
        %v1115 = vadd.f32 0.0, %v1114
        %v1116 = vpop.f32.mrf.mxu0
        %v1117 = vadd.f32 0.0, %v1116
        %1118 = vmatmul.bf16.gmra.mxu0 %v1005
        %v1119 = vpop.f32.mrf.mxu0
        %v1120 = vadd.f32 0.0, %v1119
        %v1121 = vpop.f32.mrf.mxu0
        %v1122 = vadd.f32 0.0, %v1121
        %1123 = vmatmul.bf16.gmra.mxu0 %v1006
        %v1124 = vpop.f32.mrf.mxu0
        %v1125 = vadd.f32 0.0, %v1124
        %v1126 = vpop.f32.mrf.mxu0
        %v1127 = vadd.f32 0.0, %v1126
        %1128 = vmatmul.bf16.gmra.mxu0 %v1007
        %v1129 = vpop.f32.mrf.mxu0
        %v1130 = vadd.f32 0.0, %v1129
        %v1131 = vpop.f32.mrf.mxu0
        %v1132 = vadd.f32 0.0, %v1131
        %1133 = vmatmul.bf16.gmra.mxu0 %v1008
        %v1134 = vpop.f32.mrf.mxu0
        %v1135 = vadd.f32 0.0, %v1134
        %v1136 = vpop.f32.mrf.mxu0
        %v1137 = vadd.f32 0.0, %v1136
        %1138 = vmatmul.bf16.gmra.mxu0 %v1009
        %v1139 = vpop.f32.mrf.mxu0
        %v1140 = vadd.f32 0.0, %v1139
        %v1141 = vpop.f32.mrf.mxu0
        %v1142 = vadd.f32 0.0, %v1141
        %1143 = vmatmul.bf16.gmra.mxu0 %v1010
        %v1144 = vpop.f32.mrf.mxu0
        %v1145 = vadd.f32 0.0, %v1144
        %v1146 = vpop.f32.mrf.mxu0
        %v1147 = vadd.f32 0.0, %v1146
        %1148 = vmatmul.bf16.gmra.mxu0 %v1011
        %v1149 = vpop.f32.mrf.mxu0
        %v1150 = vadd.f32 0.0, %v1149
        %v1151 = vpop.f32.mrf.mxu0
        %v1152 = vadd.f32 0.0, %v1151
        %1153 = vmatmul.bf16.gmra.mxu0 %v1012
        %v1154 = vpop.f32.mrf.mxu0
        %v1155 = vadd.f32 0.0, %v1154
        %v1156 = vpop.f32.mrf.mxu0
        %v1157 = vadd.f32 0.0, %v1156
        %1158 = vmatmul.bf16.gmra.mxu0 %v1013
        %v1159 = vpop.f32.mrf.mxu0
        %v1160 = vadd.f32 0.0, %v1159
        %v1161 = vpop.f32.mrf.mxu0
        %v1162 = vadd.f32 0.0, %v1161
        %1163 = vmatmul.bf16.gmra.mxu0 %v1014
        %v1164 = vpop.f32.mrf.mxu0
        %v1165 = vadd.f32 0.0, %v1164
        %v1166 = vpop.f32.mrf.mxu0
        %v1167 = vadd.f32 0.0, %v1166
        %1168 = vdwg.mxu0
        %v1169 = vadd.f32 %v888, %v1090
        %v1170 = vadd.f32 %v890, %v1092
        %v1171 = vadd.f32 %v893, %v1095
        %v1172 = vadd.f32 %v895, %v1097
        %v1173 = vadd.f32 %v898, %v1100
        %v1174 = vadd.f32 %v900, %v1102
        %v1175 = vadd.f32 %v903, %v1105
        %v1176 = vadd.f32 %v905, %v1107
        %v1177 = vadd.f32 %v908, %v1110
        %v1178 = vadd.f32 %v910, %v1112
        %v1179 = vadd.f32 %v913, %v1115
        %v1180 = vadd.f32 %v915, %v1117
        %v1181 = vadd.f32 %v918, %v1120
        %v1182 = vadd.f32 %v920, %v1122
        %v1183 = vadd.f32 %v923, %v1125
        %v1184 = vadd.f32 %v925, %v1127
        %v1185 = vadd.f32 %v928, %v1130
        %v1186 = vadd.f32 %v930, %v1132
        %v1187 = vadd.f32 %v933, %v1135
        %v1188 = vadd.f32 %v935, %v1137
        %v1189 = vadd.f32 %v938, %v1140
        %v1190 = vadd.f32 %v940, %v1142
        %v1191 = vadd.f32 %v943, %v1145
        %v1192 = vadd.f32 %v945, %v1147
        %v1193 = vadd.f32 %v948, %v1150
        %v1194 = vadd.f32 %v950, %v1152
        %v1195 = vadd.f32 %v953, %v1155
        %v1196 = vadd.f32 %v955, %v1157
        %v1197 = vadd.f32 %v958, %v1160
        %v1198 = vadd.f32 %v960, %v1162
        %v1199 = vadd.f32 %v963, %v1165
        %v1200 = vadd.f32 %v965, %v1167
        %v1201 = vld [vmem:[%s5] sm:$0x1]
        %v1203 = vperm.slane %v1201, 0
        %v1205 = vadd.f32 %v1169, %v1203
        %v1206 = vadd.f32 %v1170, %v1203
        %v1207 = vadd.f32 %v1171, %v1203
        %v1208 = vadd.f32 %v1172, %v1203
        %v1209 = vadd.f32 %v1173, %v1203
        %v1210 = vadd.f32 %v1174, %v1203
        %v1211 = vadd.f32 %v1175, %v1203
        %v1212 = vadd.f32 %v1176, %v1203
        %v1213 = vadd.f32 %v1177, %v1203
        %v1214 = vadd.f32 %v1178, %v1203
        %v1215 = vadd.f32 %v1179, %v1203
        %v1216 = vadd.f32 %v1180, %v1203
        %v1217 = vadd.f32 %v1181, %v1203
        %v1218 = vadd.f32 %v1182, %v1203
        %v1219 = vadd.f32 %v1183, %v1203
        %v1220 = vadd.f32 %v1184, %v1203
        %v1221 = vadd.f32 %v1185, %v1203
        %v1222 = vadd.f32 %v1186, %v1203
        %v1223 = vadd.f32 %v1187, %v1203
        %v1224 = vadd.f32 %v1188, %v1203
        %v1225 = vadd.f32 %v1189, %v1203
        %v1226 = vadd.f32 %v1190, %v1203
        %v1227 = vadd.f32 %v1191, %v1203
        %v1228 = vadd.f32 %v1192, %v1203
        %v1229 = vadd.f32 %v1193, %v1203
        %v1230 = vadd.f32 %v1194, %v1203
        %v1231 = vadd.f32 %v1195, %v1203
        %v1232 = vadd.f32 %v1196, %v1203
        %v1233 = vadd.f32 %v1197, %v1203
        %v1234 = vadd.f32 %v1198, %v1203
        %v1235 = vadd.f32 %v1199, %v1203
        %v1236 = vadd.f32 %v1200, %v1203
        %v1237 = vadd.f32 %v1205, %v486
        %v1238 = vadd.f32 %v1206, %v487
        %v1239 = vadd.f32 %v1207, %v488
        %v1240 = vadd.f32 %v1208, %v489
        %v1241 = vadd.f32 %v1209, %v490
        %v1242 = vadd.f32 %v1210, %v491
        %v1243 = vadd.f32 %v1211, %v492
        %v1244 = vadd.f32 %v1212, %v493
        %v1245 = vadd.f32 %v1213, %v494
        %v1246 = vadd.f32 %v1214, %v495
        %v1247 = vadd.f32 %v1215, %v496
        %v1248 = vadd.f32 %v1216, %v497
        %v1249 = vadd.f32 %v1217, %v498
        %v1250 = vadd.f32 %v1218, %v499
        %v1251 = vadd.f32 %v1219, %v500
        %v1252 = vadd.f32 %v1220, %v501
        %v1253 = vadd.f32 %v1221, %v502
        %v1254 = vadd.f32 %v1222, %v503
        %v1255 = vadd.f32 %v1223, %v504
        %v1256 = vadd.f32 %v1224, %v505
        %v1257 = vadd.f32 %v1225, %v506
        %v1258 = vadd.f32 %v1226, %v507
        %v1259 = vadd.f32 %v1227, %v508
        %v1260 = vadd.f32 %v1228, %v509
        %v1261 = vadd.f32 %v1229, %v510
        %v1262 = vadd.f32 %v1230, %v511
        %v1263 = vadd.f32 %v1231, %v512
        %v1264 = vadd.f32 %v1232, %v513
        %v1265 = vadd.f32 %v1233, %v514
        %v1266 = vadd.f32 %v1234, %v515
        %v1267 = vadd.f32 %v1235, %v516
        %v1268 = vadd.f32 %v1236, %v517
        %v1269 = vld [vmem:[%s379] sm:$0xf]
        %v1270 = vld [vmem:[%s379 + $0x4] sm:$0xf]
        %v1271 = vld [vmem:[%s379 + $0x8] sm:$0xf]
        %v1272 = vld [vmem:[%s379 + $0xc] sm:$0xf]
        %v1273 = vld [vmem:[%s379 + $0x10] sm:$0xf]
        %v1274 = vld [vmem:[%s379 + $0x14] sm:$0xf]
        %v1275 = vld [vmem:[%s379 + $0x18] sm:$0xf]
        %v1276 = vld [vmem:[%s379 + $0x1c] sm:$0xf]
        %v1277 = vld [vmem:[%s379 + $0x20] sm:$0xf]
        %v1278 = vld [vmem:[%s379 + $0x24] sm:$0xf]
        %v1279 = vld [vmem:[%s379 + $0x28] sm:$0xf]
        %v1280 = vld [vmem:[%s379 + $0x2c] sm:$0xf]
        %v1281 = vld [vmem:[%s379 + $0x30] sm:$0xf]
        %v1282 = vld [vmem:[%s379 + $0x34] sm:$0xf]
        %v1283 = vld [vmem:[%s379 + $0x38] sm:$0xf]
        %v1284 = vld [vmem:[%s379 + $0x3c] sm:$0xf]
        %v1285 = vld [vmem:[%s379 + $0x40] sm:$0xf]
        %v1286 = vld [vmem:[%s379 + $0x44] sm:$0xf]
        %v1287 = vld [vmem:[%s379 + $0x48] sm:$0xf]
        %v1288 = vld [vmem:[%s379 + $0x4c] sm:$0xf]
        %v1289 = vld [vmem:[%s379 + $0x50] sm:$0xf]
        %v1290 = vld [vmem:[%s379 + $0x54] sm:$0xf]
        %v1291 = vld [vmem:[%s379 + $0x58] sm:$0xf]
        %v1292 = vld [vmem:[%s379 + $0x5c] sm:$0xf]
        %v1293 = vld [vmem:[%s379 + $0x60] sm:$0xf]
        %v1294 = vld [vmem:[%s379 + $0x64] sm:$0xf]
        %v1295 = vld [vmem:[%s379 + $0x68] sm:$0xf]
        %v1296 = vld [vmem:[%s379 + $0x6c] sm:$0xf]
        %v1297 = vld [vmem:[%s379 + $0x70] sm:$0xf]
        %v1298 = vld [vmem:[%s379 + $0x74] sm:$0xf]
        %v1299 = vld [vmem:[%s379 + $0x78] sm:$0xf]
        %v1300 = vld [vmem:[%s379 + $0x7c] sm:$0xf]
        %v1301 = vunpack.c.l.bf16 %v1269
        %v1302 = vunpack.c.l.bf16 %v1270
        %v1303 = vunpack.c.l.bf16 %v1271
        %v1304 = vunpack.c.l.bf16 %v1272
        %v1305 = vunpack.c.l.bf16 %v1273
        %v1306 = vunpack.c.l.bf16 %v1274
        %v1307 = vunpack.c.l.bf16 %v1275
        %v1308 = vunpack.c.l.bf16 %v1276
        %v1309 = vunpack.c.l.bf16 %v1277
        %v1310 = vunpack.c.l.bf16 %v1278
        %v1311 = vunpack.c.l.bf16 %v1279
        %v1312 = vunpack.c.l.bf16 %v1280
        %v1313 = vunpack.c.l.bf16 %v1281
        %v1314 = vunpack.c.l.bf16 %v1282
        %v1315 = vunpack.c.l.bf16 %v1283
        %v1316 = vunpack.c.l.bf16 %v1284
        %v1317 = vunpack.c.l.bf16 %v1285
        %v1318 = vunpack.c.l.bf16 %v1286
        %v1319 = vunpack.c.l.bf16 %v1287
        %v1320 = vunpack.c.l.bf16 %v1288
        %v1321 = vunpack.c.l.bf16 %v1289
        %v1322 = vunpack.c.l.bf16 %v1290
        %v1323 = vunpack.c.l.bf16 %v1291
        %v1324 = vunpack.c.l.bf16 %v1292
        %v1325 = vunpack.c.l.bf16 %v1293
        %v1326 = vunpack.c.l.bf16 %v1294
        %v1327 = vunpack.c.l.bf16 %v1295
        %v1328 = vunpack.c.l.bf16 %v1296
        %v1329 = vunpack.c.l.bf16 %v1297
        %v1330 = vunpack.c.l.bf16 %v1298
        %v1331 = vunpack.c.l.bf16 %v1299
        %v1332 = vunpack.c.l.bf16 %v1300
        %v1333 = vadd.f32 %v1237, %v1301
        %v1334 = vadd.f32 %v1238, %v1302
        %v1335 = vadd.f32 %v1239, %v1303
        %v1336 = vadd.f32 %v1240, %v1304
        %v1337 = vadd.f32 %v1241, %v1305
        %v1338 = vadd.f32 %v1242, %v1306
        %v1339 = vadd.f32 %v1243, %v1307
        %v1340 = vadd.f32 %v1244, %v1308
        %v1341 = vadd.f32 %v1245, %v1309
        %v1342 = vadd.f32 %v1246, %v1310
        %v1343 = vadd.f32 %v1247, %v1311
        %v1344 = vadd.f32 %v1248, %v1312
        %v1345 = vadd.f32 %v1249, %v1313
        %v1346 = vadd.f32 %v1250, %v1314
        %v1347 = vadd.f32 %v1251, %v1315
        %v1348 = vadd.f32 %v1252, %v1316
        %v1349 = vadd.f32 %v1253, %v1317
        %v1350 = vadd.f32 %v1254, %v1318
        %v1351 = vadd.f32 %v1255, %v1319
        %v1352 = vadd.f32 %v1256, %v1320
        %v1353 = vadd.f32 %v1257, %v1321
        %v1354 = vadd.f32 %v1258, %v1322
        %v1355 = vadd.f32 %v1259, %v1323
        %v1356 = vadd.f32 %v1260, %v1324
        %v1357 = vadd.f32 %v1261, %v1325
        %v1358 = vadd.f32 %v1262, %v1326
        %v1359 = vadd.f32 %v1263, %v1327
        %v1360 = vadd.f32 %v1264, %v1328
        %v1361 = vadd.f32 %v1265, %v1329
        %v1362 = vadd.f32 %v1266, %v1330
        %v1363 = vadd.f32 %v1267, %v1331
        %v1364 = vadd.f32 %v1268, %v1332
        %v1365 = vmax.f32 %v1333, 0.0
        %v1366 = vmax.f32 %v1334, 0.0
        %v1367 = vmax.f32 %v1335, 0.0
        %v1368 = vmax.f32 %v1336, 0.0
        %v1369 = vmax.f32 %v1337, 0.0
        %v1370 = vmax.f32 %v1338, 0.0
        %v1371 = vmax.f32 %v1339, 0.0
        %v1372 = vmax.f32 %v1340, 0.0
        %v1373 = vmax.f32 %v1341, 0.0
        %v1374 = vmax.f32 %v1342, 0.0
        %v1375 = vmax.f32 %v1343, 0.0
        %v1376 = vmax.f32 %v1344, 0.0
        %v1377 = vmax.f32 %v1345, 0.0
        %v1378 = vmax.f32 %v1346, 0.0
        %v1379 = vmax.f32 %v1347, 0.0
        %v1380 = vmax.f32 %v1348, 0.0
        %v1381 = vmax.f32 %v1349, 0.0
        %v1382 = vmax.f32 %v1350, 0.0
        %v1383 = vmax.f32 %v1351, 0.0
        %v1384 = vmax.f32 %v1352, 0.0
        %v1385 = vmax.f32 %v1353, 0.0
        %v1386 = vmax.f32 %v1354, 0.0
        %v1387 = vmax.f32 %v1355, 0.0
        %v1388 = vmax.f32 %v1356, 0.0
        %v1389 = vmax.f32 %v1357, 0.0
        %v1390 = vmax.f32 %v1358, 0.0
        %v1391 = vmax.f32 %v1359, 0.0
        %v1392 = vmax.f32 %v1360, 0.0
        %v1393 = vmax.f32 %v1361, 0.0
        %v1394 = vmax.f32 %v1362, 0.0
        %v1395 = vmax.f32 %v1363, 0.0
        %v1396 = vmax.f32 %v1364, 0.0
        %v1397 = vpack.c.bf16 %v1365, %v1365
        %v1398 = vpack.c.bf16 %v1366, %v1366
        %v1399 = vpack.c.bf16 %v1367, %v1367
        %v1400 = vpack.c.bf16 %v1368, %v1368
        %v1401 = vpack.c.bf16 %v1369, %v1369
        %v1402 = vpack.c.bf16 %v1370, %v1370
        %v1403 = vpack.c.bf16 %v1371, %v1371
        %v1404 = vpack.c.bf16 %v1372, %v1372
        %v1405 = vpack.c.bf16 %v1373, %v1373
        %v1406 = vpack.c.bf16 %v1374, %v1374
        %v1407 = vpack.c.bf16 %v1375, %v1375
        %v1408 = vpack.c.bf16 %v1376, %v1376
        %v1409 = vpack.c.bf16 %v1377, %v1377
        %v1410 = vpack.c.bf16 %v1378, %v1378
        %v1411 = vpack.c.bf16 %v1379, %v1379
        %v1412 = vpack.c.bf16 %v1380, %v1380
        %v1413 = vpack.c.bf16 %v1381, %v1381
        %v1414 = vpack.c.bf16 %v1382, %v1382
        %v1415 = vpack.c.bf16 %v1383, %v1383
        %v1416 = vpack.c.bf16 %v1384, %v1384
        %v1417 = vpack.c.bf16 %v1385, %v1385
        %v1418 = vpack.c.bf16 %v1386, %v1386
        %v1419 = vpack.c.bf16 %v1387, %v1387
        %v1420 = vpack.c.bf16 %v1388, %v1388
        %v1421 = vpack.c.bf16 %v1389, %v1389
        %v1422 = vpack.c.bf16 %v1390, %v1390
        %v1423 = vpack.c.bf16 %v1391, %v1391
        %v1424 = vpack.c.bf16 %v1392, %v1392
        %v1425 = vpack.c.bf16 %v1393, %v1393
        %v1426 = vpack.c.bf16 %v1394, %v1394
        %v1427 = vpack.c.bf16 %v1395, %v1395
        %v1428 = vpack.c.bf16 %v1396, %v1396
        %1429 = vst [vmem:[%s428] sm:$0xf] %v1397
        %1430 = vst [vmem:[%s428 + $0x4] sm:$0xf] %v1398
        %1431 = vst [vmem:[%s428 + $0x8] sm:$0xf] %v1399
        %1432 = vst [vmem:[%s428 + $0xc] sm:$0xf] %v1400
        %1433 = vst [vmem:[%s428 + $0x10] sm:$0xf] %v1401
        %1434 = vst [vmem:[%s428 + $0x14] sm:$0xf] %v1402
        %1435 = vst [vmem:[%s428 + $0x18] sm:$0xf] %v1403
        %1436 = vst [vmem:[%s428 + $0x1c] sm:$0xf] %v1404
        %1437 = vst [vmem:[%s428 + $0x20] sm:$0xf] %v1405
        %1438 = vst [vmem:[%s428 + $0x24] sm:$0xf] %v1406
        %1439 = vst [vmem:[%s428 + $0x28] sm:$0xf] %v1407
        %1440 = vst [vmem:[%s428 + $0x2c] sm:$0xf] %v1408
        %1441 = vst [vmem:[%s428 + $0x30] sm:$0xf] %v1409
        %1442 = vst [vmem:[%s428 + $0x34] sm:$0xf] %v1410
        %1443 = vst [vmem:[%s428 + $0x38] sm:$0xf] %v1411
        %1444 = vst [vmem:[%s428 + $0x3c] sm:$0xf] %v1412
        %1445 = vst [vmem:[%s428 + $0x40] sm:$0xf] %v1413
        %1446 = vst [vmem:[%s428 + $0x44] sm:$0xf] %v1414
        %1447 = vst [vmem:[%s428 + $0x48] sm:$0xf] %v1415
        %1448 = vst [vmem:[%s428 + $0x4c] sm:$0xf] %v1416
        %1449 = vst [vmem:[%s428 + $0x50] sm:$0xf] %v1417
        %1450 = vst [vmem:[%s428 + $0x54] sm:$0xf] %v1418
        %1451 = vst [vmem:[%s428 + $0x58] sm:$0xf] %v1419
        %1452 = vst [vmem:[%s428 + $0x5c] sm:$0xf] %v1420
        %1453 = vst [vmem:[%s428 + $0x60] sm:$0xf] %v1421
        %1454 = vst [vmem:[%s428 + $0x64] sm:$0xf] %v1422
        %1455 = vst [vmem:[%s428 + $0x68] sm:$0xf] %v1423
        %1456 = vst [vmem:[%s428 + $0x6c] sm:$0xf] %v1424
        %1457 = vst [vmem:[%s428 + $0x70] sm:$0xf] %v1425
        %1458 = vst [vmem:[%s428 + $0x74] sm:$0xf] %v1426
        %1459 = vst [vmem:[%s428 + $0x78] sm:$0xf] %v1427
        %1460 = vst [vmem:[%s428 + $0x7c] sm:$0xf] %v1428
        %s1461 = sand.u32 %s199, 1
        %s1462 = scalar_lea.sflag [#allocation5], %s1461
        %s1463 = sand.u32 %s199, 1
        %s1464 = smul.addr %s1463, 128
        %s1465 = scalar_lea.vmem [#allocation12], %s1464
        // Predicated region
        $region65: #{tpu_custom_call.1} parent=43 // pred_check
          %p1466 = pneg %p209
        $region66: #{tpu_custom_call.1} parent=43 // pred_check_branch
          %1468 = sbr.rel (%p1466) target = $region68
        $region67: #{tpu_custom_call.1} parent=43 // pred_region
          %s1469 = smul.u32 32, %s29
          %1471 = vsyncadd %s1462, 0
          %s1472 = smul.addr %s1469, 4
          %s1473 = scalar_lea.hbm %s6, %s1472
          %s1474 = sshll.u32 %s1465, 4
          %s1475 = int_to_ptr.vmem [resolvable:$true] %s1474
          %s1476 = sshll.u32 %s1473, 4
          %s1477 = int_to_ptr.hbm [resolvable:$true] %s1476
          %1482 = dma.vmem_to_hbm [thread:$0]  %s1475, 2048, %s1477, %s1462, 64, 64, 4
        $region68: #{tpu_custom_call.1} parent=43 // pred_fallthru
          _
      $region44: #{tpu_custom_call.1} parent=5 // pred_fallthru
        _
      %p1483 = scmp.le.s32.totalorder 2, %s24
      // Predicated region
      $region69: #{tpu_custom_call.1} parent=5 // pred_check
        %p1484 = pneg %p1483
      $region70: #{tpu_custom_call.1} parent=5 // pred_check_branch
        %1486 = sbr.rel (%p1484) target = $region72
      $region71: #{tpu_custom_call.1} parent=5 // pred_region
        %s1487 = ssub.s32 %s24, 2
        // Predicated region
        $region73: #{tpu_custom_call.1} parent=71 // pred_check
          %p1488 = pneg %p215
        $region74: #{tpu_custom_call.1} parent=71 // pred_check_branch
          %1490 = sbr.rel (%p1488) target = $region76
        $region75: #{tpu_custom_call.1} parent=71 // pred_region
          %s1491 = sand.u32 %s200, 1
          %s1492 = scalar_lea.sflag [#allocation5], %s1491
          %s1493 = sand.u32 %s200, 1
          %s1494 = smul.addr %s1493, 128
          %s1495 = scalar_lea.vmem [#allocation12], %s1494
          %1497 = dma.done %s1492, 2048
        $region76: #{tpu_custom_call.1} parent=71 // pred_fallthru
          _
      $region72: #{tpu_custom_call.1} parent=5 // pred_fallthru
        _
    $region6: #{tpu_custom_call.1} parent=1 // loop_footer
      %s28 = sadd.s32 1, %s24
    $region7: #{tpu_custom_call.1} parent=1 // loop_footer_branch
      %23 = sbr.rel target = $region3
    $region8: #{tpu_custom_call.1} parent=1 // loop_exit
      _
    %1498 = vsyncpa [#allocation4], 1
    %s1499 = scalar_lea.sflag [#allocation4], 1
    %1500 = vsyncpa %s1499, 1
    %1501 = vsyncpa [#allocation7], 1
    %s1502 = scalar_lea.sflag [#allocation7], 1
    %1503 = vsyncpa %s1502, 1
    %1504 = vsyncpa [#allocation10], 1
    %s1505 = scalar_lea.sflag [#allocation10], 1
    %1506 = vsyncpa %s1505, 1
    %1507 = vsyncpa [#allocation5], 1
    %s1508 = scalar_lea.sflag [#allocation5], 1
    %1509 = vsyncpa %s1508, 1

</llo_original>
